<compile_context>
chip_gen: v7x
topology: tpu7x:2x2x1
jax: 0.10.0
libtpu: 0.0.40
codegen_flags: <defaults>
</compile_context>

<pallas_src>
import functools
import math

import jax
import jax.numpy as jnp
from jax.experimental import pallas as pl
from jax.experimental.pallas import tpu as pltpu


# ---------------------------------------------------------------------------
# Kernel body (shared by masked / maskless variants)
# ---------------------------------------------------------------------------
def _cmha_body(mask_f32, q_ref, k_ref, v_ref,
               wq_ref, bq_ref, wk_ref, bk_ref, wv_ref, bv_ref,
               wo_ref, bo_ref, o_ref, kproj_ref, vproj_ref,
               *, num_head, approx_recip):
    bt, tq, q_size = q_ref.shape
    _, sk, k_in = k_ref.shape
    v_in = v_ref.shape[-1]
    key_size = wq_ref.shape[-1]
    value_size = wv_ref.shape[-1]
    d_k = key_size // num_head
    d_v = value_size // num_head
    cdt = q_ref.dtype                                   # MXU compute dtype (bf16-friendly)

    # --- K / V projections: full-width matmuls, computed once per batch tile and cached
    #     in VMEM scratch; reused across all query tiles (grid axis 1, "arbitrary").
    @pl.when(pl.program_id(1) == 0)
    def _():
        k2 = k_ref[...].reshape(bt * sk, k_in)
        v2 = v_ref[...].reshape(bt * sk, v_in)
        kproj_ref[...] = (jnp.dot(k2, wk_ref[...], preferred_element_type=jnp.float32)
                          + bk_ref[...]).astype(cdt)
        vproj_ref[...] = (jnp.dot(v2, wv_ref[...], preferred_element_type=jnp.float32)
                          + bv_ref[...]).astype(cdt)

    # --- Q projection for this query tile (1/sqrt(d_k) already folded into wq/bq).
    q2 = q_ref[...].reshape(bt * tq, q_size)
    qall = (jnp.dot(q2, wq_ref[...], preferred_element_type=jnp.float32)
            + bq_ref[...]).astype(cdt)                  # (bt*tq, key_size)
    kall = kproj_ref[...]                               # (bt*sk, key_size)
    vall = vproj_ref[...]                               # (bt*sk, value_size)

    # TODO(synk): for very large num_head, move heads onto an "arbitrary" grid axis (P3)
    # instead of this static unroll to bound code size / vreg live ranges.
    heads = []
    for h in range(num_head):                           # static unroll over heads
        qh = qall[:, h * d_k:(h + 1) * d_k].reshape(bt, tq, d_k)
        kh = kall[:, h * d_k:(h + 1) * d_k].reshape(bt, sk, d_k)
        vh = vall[:, h * d_v:(h + 1) * d_v].reshape(bt, sk, d_v)

        # Scores: contract the last dims directly (no materialized K^T); f32 softmax.
        s = jnp.einsum("bqd,bkd->bqk", qh, kh, preferred_element_type=jnp.float32)
        s = s - jnp.max(s, axis=-1, keepdims=True)
        p = jnp.exp(s)
        p = p * pl.reciprocal(jnp.sum(p, axis=-1, keepdims=True), approx=approx_recip)
        if mask_f32 is not None:
            # "constrain" mask applied AFTER softmax, no renormalization
            # (exactly like ConstrainDotAttention.forward).
            p = p * mask_f32
        # TODO(synk): attention-probability dropout omitted (eval/inference semantics).

        ah = jnp.einsum("bqk,bkd->bqd", p.astype(cdt), vh,
                        preferred_element_type=jnp.float32)
        heads.append(ah.reshape(bt * tq, d_v).astype(cdt))

    # Fused "concat heads + output projection" as ONE full-width (K = value_size) matmul.
    heads_cat = jnp.concatenate(heads, axis=-1)          # (bt*tq, value_size)
    out = (jnp.dot(heads_cat, wo_ref[...], preferred_element_type=jnp.float32)
           + bo_ref[...])
    o_ref[...] = out.reshape(bt, tq, value_size).astype(o_ref.dtype)


def _cmha_kernel_masked(mask_ref, q_ref, k_ref, v_ref,
                        wq_ref, bq_ref, wk_ref, bk_ref, wv_ref, bv_ref,
                        wo_ref, bo_ref, o_ref, kproj_ref, vproj_ref,
                        *, num_head, approx_recip):
    _cmha_body(mask_ref[...].astype(jnp.float32), q_ref, k_ref, v_ref,
               wq_ref, bq_ref, wk_ref, bk_ref, wv_ref, bv_ref,
               wo_ref, bo_ref, o_ref, kproj_ref, vproj_ref,
               num_head=num_head, approx_recip=approx_recip)


def _cmha_kernel_nomask(q_ref, k_ref, v_ref,
                        wq_ref, bq_ref, wk_ref, bk_ref, wv_ref, bv_ref,
                        wo_ref, bo_ref, o_ref, kproj_ref, vproj_ref,
                        *, num_head, approx_recip):
    _cmha_body(None, q_ref, k_ref, v_ref,
               wq_ref, bq_ref, wk_ref, bk_ref, wv_ref, bv_ref,
               wo_ref, bo_ref, o_ref, kproj_ref, vproj_ref,
               num_head=num_head, approx_recip=approx_recip)


# ---------------------------------------------------------------------------
# Tiling / VMEM heuristics (generation-aware)
# ---------------------------------------------------------------------------
def _pick_block_q(sq):
    """Query tile: full sq for small sequences; otherwise a multiple-of-8 divisor <=256."""
    if sq <= 256 or sq % 8 != 0:
        return sq
    for cand in range(256, 7, -8):
        if sq % cand == 0:
            return cand
    return sq


def _estimate_step_bytes(block_b, block_q, sk, q_size, k_in, v_in, key_size, value_size,
                         in_b, mask_b, out_b, with_mask):
    """Rough per-grid-step VMEM footprint (double-buffered streams + constants + scratch)."""
    rows_q = block_b * block_q
    rows_k = block_b * sk
    stream = (rows_q * q_size * in_b
              + rows_k * (k_in + v_in) * in_b
              + rows_q * value_size * out_b)
    if with_mask:
        stream += block_b * block_q * sk * mask_b
    stream *= 2                                       # double-buffered pipeline
    weights = 2 * (q_size * key_size + k_in * key_size
                   + v_in * value_size + value_size * value_size) * in_b
    scratch = rows_k * (key_size + value_size) * in_b  # cached K/V projections
    interm = (rows_q * key_size * in_b                 # qall
              + 3 * block_b * block_q * sk * 4         # s / p (f32, one head live)
              + rows_q * value_size * (in_b + 4))      # heads concat + f32 out
    return stream + weights + scratch + int(1.5 * interm)


def _pick_block_b(batch, est_fn, budget, prefer_parallel_steps):
    """Largest batch-divisor tile that fits the VMEM budget; on v7x-class chips
    (2 TensorCores) prefer >=2 parallel grid steps along the batch axis."""
    divisors = [d for d in range(1, batch + 1) if batch % d == 0]
    fitting = [d for d in divisors if est_fn(d) <= budget] or [divisors[0]]
    best = fitting[-1]
    if prefer_parallel_steps:
        multi = [d for d in fitting if batch // d >= 2]
        if multi:
            best = multi[-1]
    return best


# ---------------------------------------------------------------------------
# Public wrapper
# ---------------------------------------------------------------------------
def constrain_multi_head_attention(Q, K, V, params, *, num_head, mask=None,
                                   block_b=None, block_q=None,
                                   compute_dtype=None, mask_dtype=jnp.bfloat16,
                                   approx_recip=False):
    """Q: [B, sq, query_size], K: [B, sk, key_size_in], V: [B, sk, value_size_in].
    `mask` is the post-softmax multiplicative constraint [B, sq, sk] (the module's
    adjacency+self-loop `dist` path or `atte_mask_out` path). mask=None runs a
    maskless kernel variant (no ones tensor materialized).
    `compute_dtype` (e.g. jnp.bfloat16) sets the MXU operand dtype; accumulation is f32.
    # TODO(synk): dist-tuple additive path (Q += dist[0], K += dist[1]) and dropout are
    # not handled inside the kernel; apply them in the caller if needed.
    """
    batch, sq, q_size = Q.shape
    _, sk, k_in = K.shape
    v_in = V.shape[-1]

    wq, bq = params["wq"], params["bq"]
    wk, bk = params["wk"], params["bk"]
    wv, bv = params["wv"], params["bv"]
    wo, bo = params["wo"], params["bo"]

    key_size = wq.shape[0]
    value_size = wv.shape[0]
    assert key_size % num_head == 0 and value_size % num_head == 0
    d_k = key_size // num_head

    out_dtype = Q.dtype
    cdt = jnp.dtype(compute_dtype) if compute_dtype is not None else jnp.dtype(Q.dtype)

    # Trace-time (free) weight re-layout: transpose to (in, out) for the MXU and fold
    # the 1/sqrt(d_k) softmax scale into the Q projection weights/bias.
    inv_scale = 1.0 / math.sqrt(d_k)
    wqT = (wq.T * inv_scale).astype(cdt)                 # (q_size,     key_size)
    bq2 = (bq.reshape(1, key_size) * inv_scale).astype(jnp.float32)
    wkT = wk.T.astype(cdt)                               # (k_in,       key_size)
    bk2 = bk.reshape(1, key_size).astype(jnp.float32)
    wvT = wv.T.astype(cdt)                               # (v_in,       value_size)
    bv2 = bv.reshape(1, value_size).astype(jnp.float32)
    woT = wo.T.astype(cdt)                               # (value_size, value_size)
    bo2 = bo.reshape(1, value_size).astype(jnp.float32)

    Qc, Kc, Vc = Q.astype(cdt), K.astype(cdt), V.astype(cdt)

    # Generation-aware VMEM budget: v7x has 64 MiB/TC, v5e/v6e have 128 MiB.
    try:
        vmem_cap = int(pltpu.get_tpu_info().vmem_capacity_bytes)
    except Exception:
        vmem_cap = 64 * 1024 * 1024                      # conservative fallback
    vmem_limit = max(32 * 1024 * 1024, int(vmem_cap * 0.75))   # ~48 MiB v7x, ~96 MiB v6e
    prefer_parallel = vmem_cap <= 64 * 1024 * 1024       # v7x-class: 2 TensorCores

    if block_q is None:
        block_q = _pick_block_q(sq)
    assert sq % block_q == 0

    in_b = jnp.dtype(cdt).itemsize
    mask_b = jnp.dtype(mask_dtype).itemsize
    out_b = jnp.dtype(out_dtype).itemsize

    def est(bb):
        return _estimate_step_bytes(bb, block_q, sk, q_size, k_in, v_in, key_size,
                                    value_size, in_b, mask_b, out_b,
                                    with_mask=mask is not None)

    if block_b is None:
        block_b = _pick_block_b(batch, est, int(vmem_limit * 0.9), prefer_parallel)
    assert batch % block_b == 0

    grid = (batch // block_b, sq // block_q)

    def _const_spec(arr):
        n = arr.ndim
        return pl.BlockSpec(arr.shape, lambda b, qi, _n=n: (0,) * _n)

    q_spec = pl.BlockSpec((block_b, block_q, q_size), lambda b, qi: (b, qi, 0))
    k_spec = pl.BlockSpec((block_b, sk, k_in), lambda b, qi: (b, 0, 0))
    v_spec = pl.BlockSpec((block_b, sk, v_in), lambda b, qi: (b, 0, 0))
    o_spec = pl.BlockSpec((block_b, block_q, value_size), lambda b, qi: (b, qi, 0))
    w_specs = [_const_spec(a) for a in (wqT, bq2, wkT, bk2, wvT, bv2, woT, bo2)]
    # TODO(synk): mark the constant weight specs pipeline_mode=pl.Buffered(1) (single
    # buffer) once single-buffering of top-level pallas_call operands is available.

    scratch_shapes = [pltpu.VMEM((block_b * sk, key_size), cdt),    # cached K projection
                      pltpu.VMEM((block_b * sk, value_size), cdt)]  # cached V projection

    if mask is not None:
        assert mask.shape == (batch, sq, sk)
        mask_c = mask.astype(mask_dtype)                 # stream mask in bf16 (bandwidth)
        kernel = functools.partial(_cmha_kernel_masked, num_head=num_head,
                                   approx_recip=approx_recip)
        in_specs = [pl.BlockSpec((block_b, block_q, sk), lambda b, qi: (b, qi, 0)),
                    q_spec, k_spec, v_spec, *w_specs]
        args = (mask_c, Qc, Kc, Vc, wqT, bq2, wkT, bk2, wvT, bv2, woT, bo2)
    else:
        kernel = functools.partial(_cmha_kernel_nomask, num_head=num_head,
                                   approx_recip=approx_recip)
        in_specs = [q_spec, k_spec, v_spec, *w_specs]
        args = (Qc, Kc, Vc, wqT, bq2, wkT, bk2, wvT, bv2, woT, bo2)

    grid_spec = pltpu.PrefetchScalarGridSpec(
        num_scalar_prefetch=0,
        grid=grid,
        in_specs=in_specs,
        out_specs=o_spec,
        scratch_shapes=scratch_shapes,
    )

    # NOTE: for production configs keep value_size a multiple of 128 (lane-dense stores).
    return pl.pallas_call(
        kernel,
        out_shape=jax.ShapeDtypeStruct((batch, sq, value_size), out_dtype),
        grid_spec=grid_spec,
        compiler_params=pltpu.CompilerParams(
            # q axis is "arbitrary": the cached K/V projections carry across query tiles.
            dimension_semantics=("parallel", "arbitrary"),
            vmem_limit_bytes=vmem_limit,
        ),
    )(*args)


# ---------------------------------------------------------------------------
# Plain-JAX reference & param init (mirror the PyTorch module, eval mode)
# ---------------------------------------------------------------------------
def _reference(Q, K, V, params, mask, *, num_head):
    wq, bq = params["wq"], params["bq"]
    wk, bk = params["wk"], params["bk"]
    wv, bv = params["wv"], params["bv"]
    wo, bo = params["wo"], params["bo"]
    batch, sq, _ = Q.shape
    sk = K.shape[1]
    key_size, value_size = wq.shape[0], wv.shape[0]
    d_k, d_v = key_size // num_head, value_size // num_head

    q = (Q @ wq.T + bq).reshape(batch, sq, num_head, d_k).transpose(0, 2, 1, 3)
    k = (K @ wk.T + bk).reshape(batch, sk, num_head, d_k).transpose(0, 2, 1, 3)
    v = (V @ wv.T + bv).reshape(batch, sk, num_head, d_v).transpose(0, 2, 1, 3)

    scores = jnp.einsum("bhqd,bhkd->bhqk", q, k) / math.sqrt(d_k)
    p = jax.nn.softmax(scores, axis=-1)
    p = p * mask[:, None, :, :]                          # constrain mask AFTER softmax
    atte = jnp.einsum("bhqk,bhkd->bhqd", p, v)
    atte = atte.transpose(0, 2, 1, 3).reshape(batch, sq, value_size)
    return atte @ wo.T + bo


def init_params(key, query_size, key_size, value_size):
    """Weights match the module's reset_parameters; biases use torch Linear default init."""
    ks = jax.random.split(key, 8)

    def nrm(k, shape, std):
        return std * jax.random.normal(k, shape, dtype=jnp.float32)

    def uni(k, shape, fan_in):
        bound = 1.0 / math.sqrt(fan_in)
        return jax.random.uniform(k, shape, jnp.float32, -bound, bound)

    return {
        "wq": nrm(ks[0], (key_size, query_size), math.sqrt(1.0 / query_size)),
        "bq": uni(ks[1], (1, key_size), query_size),
        "wk": nrm(ks[2], (key_size, key_size), math.sqrt(1.0 / key_size)),
        "bk": uni(ks[3], (1, key_size), key_size),
        "wv": nrm(ks[4], (value_size, value_size), math.sqrt(1.0 / value_size)),
        "bv": uni(ks[5], (1, value_size), value_size),
        "wo": nrm(ks[6], (value_size, value_size), math.sqrt(1.0 / value_size)),
        "bo": uni(ks[7], (1, value_size), value_size),
    }


if __name__ == "__main__":
    # Small shapes consistent with the module's forward.
    batch, sq, sk = 2, 8, 8
    query_size = key_size = value_size = 32
    num_head = 4

    root = jax.random.PRNGKey(0)
    kq, kk, kv, kp, km = jax.random.split(root, 5)
    Q = jax.random.normal(kq, (batch, sq, query_size), dtype=jnp.float32)
    K = jax.random.normal(kk, (batch, sk, key_size), dtype=jnp.float32)
    V = jax.random.normal(kv, (batch, sk, value_size), dtype=jnp.float32)
    params = init_params(kp, query_size, key_size, value_size)

    # "Constrain" mask: adjacency + self-loop, applied after softmax (module's dist path).
    adj = (jax.random.uniform(km, (batch, sq, sk)) < 0.5).astype(jnp.float32)
    mask = adj + jnp.eye(sq, sk, dtype=jnp.float32)[None]

    # 1) f32 compute, constrain mask -> check vs plain-JAX reference.
    out = constrain_multi_head_attention(Q, K, V, params, num_head=num_head, mask=mask)
    out = jax.block_until_ready(out)
    ref = _reference(Q, K, V, params, mask, num_head=num_head)
    assert out.shape == (batch, sq, value_size)
    err = float(jnp.max(jnp.abs(out - ref)))
    assert jnp.allclose(out, ref, atol=5e-3, rtol=5e-3), f"masked mismatch: {err}"

    # 2) f32 compute, maskless kernel variant -> equals reference with an all-ones mask.
    out_nm = constrain_multi_head_attention(Q, K, V, params, num_head=num_head, mask=None)
    out_nm = jax.block_until_ready(out_nm)
    ref_nm = _reference(Q, K, V, params, jnp.ones((batch, sq, sk), jnp.float32),
                        num_head=num_head)
    err_nm = float(jnp.max(jnp.abs(out_nm - ref_nm)))
    assert jnp.allclose(out_nm, ref_nm, atol=5e-3, rtol=5e-3), f"maskless mismatch: {err_nm}"

    # 3) bf16 MXU path smoke test (inference precision; no tight tolerance asserted).
    out_bf16 = constrain_multi_head_attention(
        Q.astype(jnp.bfloat16), K.astype(jnp.bfloat16), V.astype(jnp.bfloat16),
        params, num_head=num_head, mask=mask, compute_dtype=jnp.bfloat16)
    out_bf16 = jax.block_until_ready(out_bf16)
    assert out_bf16.shape == (batch, sq, value_size)
    assert bool(jnp.all(jnp.isfinite(out_bf16.astype(jnp.float32))))

    print("KERNEL_OK")
</pallas_src>

<mosaic_0001>
module attributes {stable_mosaic.version = 11 : i64} {
  func.func @_cmha_kernel_masked(%arg0: i32, %arg1: i32, %arg2: memref<1x8x8xbf16, #tpu.memory_space<vmem>>, %arg3: memref<1x8x32xf32, #tpu.memory_space<vmem>>, %arg4: memref<1x8x32xf32, #tpu.memory_space<vmem>>, %arg5: memref<1x8x32xf32, #tpu.memory_space<vmem>>, %arg6: memref<32x32xf32, #tpu.memory_space<vmem>>, %arg7: memref<1x32xf32, #tpu.memory_space<vmem>>, %arg8: memref<32x32xf32, #tpu.memory_space<vmem>>, %arg9: memref<1x32xf32, #tpu.memory_space<vmem>>, %arg10: memref<32x32xf32, #tpu.memory_space<vmem>>, %arg11: memref<1x32xf32, #tpu.memory_space<vmem>>, %arg12: memref<32x32xf32, #tpu.memory_space<vmem>>, %arg13: memref<1x32xf32, #tpu.memory_space<vmem>>, %arg14: memref<1x8x32xf32, #tpu.memory_space<vmem>>, %arg15: memref<8x32xf32, #tpu.memory_space<vmem>>, %arg16: memref<8x32xf32, #tpu.memory_space<vmem>>) attributes {dimension_semantics = [#tpu.dimension_semantics<parallel>, #tpu.dimension_semantics<arbitrary>], iteration_bounds = array<i64: 2, 1>, scalar_prefetch = 0 : i64, scratch_operands = 2 : i64, tpu.core_type = #tpu.core_type<tc>, window_params = [{transform_indices = @transform_0, window_bounds = array<i64: 1, 8, 8>}, {transform_indices = @transform_1, window_bounds = array<i64: 1, 8, 32>}, {transform_indices = @transform_2, window_bounds = array<i64: 1, 8, 32>}, {transform_indices = @transform_3, window_bounds = array<i64: 1, 8, 32>}, {pipeline_mode = #tpu.pipeline_mode<synchronous>, transform_indices = @transform_4, window_bounds = array<i64: 32, 32>}, {pipeline_mode = #tpu.pipeline_mode<synchronous>, transform_indices = @transform_5, window_bounds = array<i64: 1, 32>}, {pipeline_mode = #tpu.pipeline_mode<synchronous>, transform_indices = @transform_6, window_bounds = array<i64: 32, 32>}, {pipeline_mode = #tpu.pipeline_mode<synchronous>, transform_indices = @transform_7, window_bounds = array<i64: 1, 32>}, {pipeline_mode = #tpu.pipeline_mode<synchronous>, transform_indices = @transform_8, window_bounds = array<i64: 32, 32>}, {pipeline_mode = #tpu.pipeline_mode<synchronous>, transform_indices = @transform_9, window_bounds = array<i64: 1, 32>}, {pipeline_mode = #tpu.pipeline_mode<synchronous>, transform_indices = @transform_10, window_bounds = array<i64: 32, 32>}, {pipeline_mode = #tpu.pipeline_mode<synchronous>, transform_indices = @transform_11, window_bounds = array<i64: 1, 32>}, {transform_indices = @transform_12, window_bounds = array<i64: 1, 8, 32>}]} {
    %c0 = arith.constant 0 : index
    %c0_0 = arith.constant 0 : index
    %c0_1 = arith.constant 0 : index
    %0 = vector.load %arg2[%c0, %c0_0, %c0_1] : memref<1x8x8xbf16, #tpu.memory_space<vmem>>, vector<1x8x8xbf16>
    %1 = arith.extf %0 : vector<1x8x8xbf16> to vector<1x8x8xf32>
    %c0_i32 = arith.constant 0 : i32
    %2 = arith.cmpi eq, %arg1, %c0_i32 : i32
    %3 = arith.extui %2 : i1 to i32
    %c0_i32_2 = arith.constant 0 : i32
    %4 = arith.cmpi ne, %3, %c0_i32_2 : i32
    scf.if %4 {
      %c0_38 = arith.constant 0 : index
      %c0_39 = arith.constant 0 : index
      %c0_40 = arith.constant 0 : index
      %102 = vector.load %arg4[%c0_38, %c0_39, %c0_40] : memref<1x8x32xf32, #tpu.memory_space<vmem>>, vector<1x8x32xf32>
      %103 = vector.shape_cast %102 : vector<1x8x32xf32> to vector<8x32xf32>
      %c0_41 = arith.constant 0 : index
      %c0_42 = arith.constant 0 : index
      %c0_43 = arith.constant 0 : index
      %104 = vector.load %arg5[%c0_41, %c0_42, %c0_43] : memref<1x8x32xf32, #tpu.memory_space<vmem>>, vector<1x8x32xf32>
      %105 = vector.shape_cast %104 : vector<1x8x32xf32> to vector<8x32xf32>
      %c0_44 = arith.constant 0 : index
      %c0_45 = arith.constant 0 : index
      %106 = vector.load %arg8[%c0_44, %c0_45] : memref<32x32xf32, #tpu.memory_space<vmem>>, vector<32x32xf32>
      %cst_46 = arith.constant dense<0.000000e+00> : vector<8x32xf32>
      %107 = tpu.matmul %103, %106, %cst_46 {dimension_numbers = #tpu.dot_dimension_numbers<[1], [0], [0], [1], [0, 0, 1, 1], [], []>} : vector<8x32xf32>, vector<32x32xf32>, vector<8x32xf32> -> vector<8x32xf32>
      %c0_47 = arith.constant 0 : index
      %c0_48 = arith.constant 0 : index
      %108 = vector.load %arg9[%c0_47, %c0_48] : memref<1x32xf32, #tpu.memory_space<vmem>>, vector<1x32xf32>
      %109 = vector.broadcast %108 : vector<1x32xf32> to vector<8x32xf32>
      %110 = arith.addf %107, %109 : vector<8x32xf32>
      %c0_49 = arith.constant 0 : index
      %c0_50 = arith.constant 0 : index
      %111 = vector.load %arg15[%c0_49, %c0_50] : memref<8x32xf32, #tpu.memory_space<vmem>>, vector<8x32xf32>
      tpu.vector_store %arg15[%c0_49, %c0_50], %110 {strides = array<i32>} : memref<8x32xf32, #tpu.memory_space<vmem>>, vector<8x32xf32>,
      %c0_51 = arith.constant 0 : index
      %c0_52 = arith.constant 0 : index
      %112 = vector.load %arg10[%c0_51, %c0_52] : memref<32x32xf32, #tpu.memory_space<vmem>>, vector<32x32xf32>
      %cst_53 = arith.constant dense<0.000000e+00> : vector<8x32xf32>
      %113 = tpu.matmul %105, %112, %cst_53 {dimension_numbers = #tpu.dot_dimension_numbers<[1], [0], [0], [1], [0, 0, 1, 1], [], []>} : vector<8x32xf32>, vector<32x32xf32>, vector<8x32xf32> -> vector<8x32xf32>
      %c0_54 = arith.constant 0 : index
      %c0_55 = arith.constant 0 : index
      %114 = vector.load %arg11[%c0_54, %c0_55] : memref<1x32xf32, #tpu.memory_space<vmem>>, vector<1x32xf32>
      %115 = vector.broadcast %114 : vector<1x32xf32> to vector<8x32xf32>
      %116 = arith.addf %113, %115 : vector<8x32xf32>
      %c0_56 = arith.constant 0 : index
      %c0_57 = arith.constant 0 : index
      %117 = vector.load %arg16[%c0_56, %c0_57] : memref<8x32xf32, #tpu.memory_space<vmem>>, vector<8x32xf32>
      tpu.vector_store %arg16[%c0_56, %c0_57], %116 {strides = array<i32>} : memref<8x32xf32, #tpu.memory_space<vmem>>, vector<8x32xf32>,
    } else {
    }
    %c0_3 = arith.constant 0 : index
    %c0_4 = arith.constant 0 : index
    %c0_5 = arith.constant 0 : index
    %5 = vector.load %arg3[%c0_3, %c0_4, %c0_5] : memref<1x8x32xf32, #tpu.memory_space<vmem>>, vector<1x8x32xf32>
    %6 = vector.shape_cast %5 : vector<1x8x32xf32> to vector<8x32xf32>
    %c0_6 = arith.constant 0 : index
    %c0_7 = arith.constant 0 : index
    %7 = vector.load %arg6[%c0_6, %c0_7] : memref<32x32xf32, #tpu.memory_space<vmem>>, vector<32x32xf32>
    %cst = arith.constant dense<0.000000e+00> : vector<8x32xf32>
    %8 = tpu.matmul %6, %7, %cst {dimension_numbers = #tpu.dot_dimension_numbers<[1], [0], [0], [1], [0, 0, 1, 1], [], []>} : vector<8x32xf32>, vector<32x32xf32>, vector<8x32xf32> -> vector<8x32xf32>
    %c0_8 = arith.constant 0 : index
    %c0_9 = arith.constant 0 : index
    %9 = vector.load %arg7[%c0_8, %c0_9] : memref<1x32xf32, #tpu.memory_space<vmem>>, vector<1x32xf32>
    %10 = vector.broadcast %9 : vector<1x32xf32> to vector<8x32xf32>
    %11 = arith.addf %8, %10 : vector<8x32xf32>
    %c0_10 = arith.constant 0 : index
    %c0_11 = arith.constant 0 : index
    %12 = vector.load %arg15[%c0_10, %c0_11] : memref<8x32xf32, #tpu.memory_space<vmem>>, vector<8x32xf32>
    %c0_12 = arith.constant 0 : index
    %c0_13 = arith.constant 0 : index
    %13 = vector.load %arg16[%c0_12, %c0_13] : memref<8x32xf32, #tpu.memory_space<vmem>>, vector<8x32xf32>
    %14 = vector.extract_strided_slice %11 {offsets = [0, 0], sizes = [8, 8], strides = [1, 1]} : vector<8x32xf32> to vector<8x8xf32>
    %15 = vector.shape_cast %14 : vector<8x8xf32> to vector<1x8x8xf32>
    %16 = vector.extract_strided_slice %12 {offsets = [0, 0], sizes = [8, 8], strides = [1, 1]} : vector<8x32xf32> to vector<8x8xf32>
    %17 = vector.shape_cast %16 : vector<8x8xf32> to vector<1x8x8xf32>
    %18 = vector.extract_strided_slice %13 {offsets = [0, 0], sizes = [8, 8], strides = [1, 1]} : vector<8x32xf32> to vector<8x8xf32>
    %19 = vector.shape_cast %18 : vector<8x8xf32> to vector<1x8x8xf32>
    "tpu.trace_start"() <{level = 10 : i32, message = "bqd,bkd->bqk"}> : () -> ()
    %cst_14 = arith.constant dense<0.000000e+00> : vector<1x8x8xf32>
    %20 = tpu.matmul %15, %17, %cst_14 {dimension_numbers = #tpu.dot_dimension_numbers<[2], [2], [1], [1], [0, 0, 0, 1, 1, 1], [0], [0]>} : vector<1x8x8xf32>, vector<1x8x8xf32>, vector<1x8x8xf32> -> vector<1x8x8xf32>
    "tpu.trace_stop"() : () -> ()
    %cst_15 = arith.constant dense<0xFF800000> : vector<1x8xf32>
    %21 = vector.multi_reduction <maximumf>, %20, %cst_15 [2] : vector<1x8x8xf32> to vector<1x8xf32>
    %22 = vector.shape_cast %21 : vector<1x8xf32> to vector<1x8x1xf32>
    %23 = vector.broadcast %22 : vector<1x8x1xf32> to vector<1x8x8xf32>
    %24 = arith.subf %20, %23 : vector<1x8x8xf32>
    %25 = math.exp %24 : vector<1x8x8xf32>
    %cst_16 = arith.constant dense<0.000000e+00> : vector<1x8xf32>
    %26 = vector.multi_reduction <add>, %25, %cst_16 [2] : vector<1x8x8xf32> to vector<1x8xf32>
    %27 = vector.shape_cast %26 : vector<1x8xf32> to vector<1x8x1xf32>
    %28 = tpu.reciprocal %27 : vector<1x8x1xf32> -> vector<1x8x1xf32>
    %29 = vector.broadcast %28 : vector<1x8x1xf32> to vector<1x8x8xf32>
    %30 = arith.mulf %25, %29 : vector<1x8x8xf32>
    %31 = arith.mulf %30, %1 : vector<1x8x8xf32>
    "tpu.trace_start"() <{level = 10 : i32, message = "bqk,bkd->bqd"}> : () -> ()
    %cst_17 = arith.constant dense<0.000000e+00> : vector<1x8x8xf32>
    %32 = tpu.matmul %31, %19, %cst_17 {dimension_numbers = #tpu.dot_dimension_numbers<[2], [1], [1], [2], [0, 0, 0, 1, 1, 2], [0], [0]>} : vector<1x8x8xf32>, vector<1x8x8xf32>, vector<1x8x8xf32> -> vector<1x8x8xf32>
    "tpu.trace_stop"() : () -> ()
    %33 = vector.shape_cast %32 : vector<1x8x8xf32> to vector<8x8xf32>
    %34 = vector.extract_strided_slice %11 {offsets = [0, 8], sizes = [8, 8], strides = [1, 1]} : vector<8x32xf32> to vector<8x8xf32>
    %35 = vector.shape_cast %34 : vector<8x8xf32> to vector<1x8x8xf32>
    %36 = vector.extract_strided_slice %12 {offsets = [0, 8], sizes = [8, 8], strides = [1, 1]} : vector<8x32xf32> to vector<8x8xf32>
    %37 = vector.shape_cast %36 : vector<8x8xf32> to vector<1x8x8xf32>
    %38 = vector.extract_strided_slice %13 {offsets = [0, 8], sizes = [8, 8], strides = [1, 1]} : vector<8x32xf32> to vector<8x8xf32>
    %39 = vector.shape_cast %38 : vector<8x8xf32> to vector<1x8x8xf32>
    "tpu.trace_start"() <{level = 10 : i32, message = "bqd,bkd->bqk"}> : () -> ()
    %cst_18 = arith.constant dense<0.000000e+00> : vector<1x8x8xf32>
    %40 = tpu.matmul %35, %37, %cst_18 {dimension_numbers = #tpu.dot_dimension_numbers<[2], [2], [1], [1], [0, 0, 0, 1, 1, 1], [0], [0]>} : vector<1x8x8xf32>, vector<1x8x8xf32>, vector<1x8x8xf32> -> vector<1x8x8xf32>
    "tpu.trace_stop"() : () -> ()
    %cst_19 = arith.constant dense<0xFF800000> : vector<1x8xf32>
    %41 = vector.multi_reduction <maximumf>, %40, %cst_19 [2] : vector<1x8x8xf32> to vector<1x8xf32>
    %42 = vector.shape_cast %41 : vector<1x8xf32> to vector<1x8x1xf32>
    %43 = vector.broadcast %42 : vector<1x8x1xf32> to vector<1x8x8xf32>
    %44 = arith.subf %40, %43 : vector<1x8x8xf32>
    %45 = math.exp %44 : vector<1x8x8xf32>
    %cst_20 = arith.constant dense<0.000000e+00> : vector<1x8xf32>
    %46 = vector.multi_reduction <add>, %45, %cst_20 [2] : vector<1x8x8xf32> to vector<1x8xf32>
    %47 = vector.shape_cast %46 : vector<1x8xf32> to vector<1x8x1xf32>
    %48 = tpu.reciprocal %47 : vector<1x8x1xf32> -> vector<1x8x1xf32>
    %49 = vector.broadcast %48 : vector<1x8x1xf32> to vector<1x8x8xf32>
    %50 = arith.mulf %45, %49 : vector<1x8x8xf32>
    %51 = arith.mulf %50, %1 : vector<1x8x8xf32>
    "tpu.trace_start"() <{level = 10 : i32, message = "bqk,bkd->bqd"}> : () -> ()
    %cst_21 = arith.constant dense<0.000000e+00> : vector<1x8x8xf32>
    %52 = tpu.matmul %51, %39, %cst_21 {dimension_numbers = #tpu.dot_dimension_numbers<[2], [1], [1], [2], [0, 0, 0, 1, 1, 2], [0], [0]>} : vector<1x8x8xf32>, vector<1x8x8xf32>, vector<1x8x8xf32> -> vector<1x8x8xf32>
    "tpu.trace_stop"() : () -> ()
    %53 = vector.shape_cast %52 : vector<1x8x8xf32> to vector<8x8xf32>
    %54 = vector.extract_strided_slice %11 {offsets = [0, 16], sizes = [8, 8], strides = [1, 1]} : vector<8x32xf32> to vector<8x8xf32>
    %55 = vector.shape_cast %54 : vector<8x8xf32> to vector<1x8x8xf32>
    %56 = vector.extract_strided_slice %12 {offsets = [0, 16], sizes = [8, 8], strides = [1, 1]} : vector<8x32xf32> to vector<8x8xf32>
    %57 = vector.shape_cast %56 : vector<8x8xf32> to vector<1x8x8xf32>
    %58 = vector.extract_strided_slice %13 {offsets = [0, 16], sizes = [8, 8], strides = [1, 1]} : vector<8x32xf32> to vector<8x8xf32>
    %59 = vector.shape_cast %58 : vector<8x8xf32> to vector<1x8x8xf32>
    "tpu.trace_start"() <{level = 10 : i32, message = "bqd,bkd->bqk"}> : () -> ()
    %cst_22 = arith.constant dense<0.000000e+00> : vector<1x8x8xf32>
    %60 = tpu.matmul %55, %57, %cst_22 {dimension_numbers = #tpu.dot_dimension_numbers<[2], [2], [1], [1], [0, 0, 0, 1, 1, 1], [0], [0]>} : vector<1x8x8xf32>, vector<1x8x8xf32>, vector<1x8x8xf32> -> vector<1x8x8xf32>
    "tpu.trace_stop"() : () -> ()
    %cst_23 = arith.constant dense<0xFF800000> : vector<1x8xf32>
    %61 = vector.multi_reduction <maximumf>, %60, %cst_23 [2] : vector<1x8x8xf32> to vector<1x8xf32>
    %62 = vector.shape_cast %61 : vector<1x8xf32> to vector<1x8x1xf32>
    %63 = vector.broadcast %62 : vector<1x8x1xf32> to vector<1x8x8xf32>
    %64 = arith.subf %60, %63 : vector<1x8x8xf32>
    %65 = math.exp %64 : vector<1x8x8xf32>
    %cst_24 = arith.constant dense<0.000000e+00> : vector<1x8xf32>
    %66 = vector.multi_reduction <add>, %65, %cst_24 [2] : vector<1x8x8xf32> to vector<1x8xf32>
    %67 = vector.shape_cast %66 : vector<1x8xf32> to vector<1x8x1xf32>
    %68 = tpu.reciprocal %67 : vector<1x8x1xf32> -> vector<1x8x1xf32>
    %69 = vector.broadcast %68 : vector<1x8x1xf32> to vector<1x8x8xf32>
    %70 = arith.mulf %65, %69 : vector<1x8x8xf32>
    %71 = arith.mulf %70, %1 : vector<1x8x8xf32>
    "tpu.trace_start"() <{level = 10 : i32, message = "bqk,bkd->bqd"}> : () -> ()
    %cst_25 = arith.constant dense<0.000000e+00> : vector<1x8x8xf32>
    %72 = tpu.matmul %71, %59, %cst_25 {dimension_numbers = #tpu.dot_dimension_numbers<[2], [1], [1], [2], [0, 0, 0, 1, 1, 2], [0], [0]>} : vector<1x8x8xf32>, vector<1x8x8xf32>, vector<1x8x8xf32> -> vector<1x8x8xf32>
    "tpu.trace_stop"() : () -> ()
    %73 = vector.shape_cast %72 : vector<1x8x8xf32> to vector<8x8xf32>
    %74 = vector.extract_strided_slice %11 {offsets = [0, 24], sizes = [8, 8], strides = [1, 1]} : vector<8x32xf32> to vector<8x8xf32>
    %75 = vector.shape_cast %74 : vector<8x8xf32> to vector<1x8x8xf32>
    %76 = vector.extract_strided_slice %12 {offsets = [0, 24], sizes = [8, 8], strides = [1, 1]} : vector<8x32xf32> to vector<8x8xf32>
    %77 = vector.shape_cast %76 : vector<8x8xf32> to vector<1x8x8xf32>
    %78 = vector.extract_strided_slice %13 {offsets = [0, 24], sizes = [8, 8], strides = [1, 1]} : vector<8x32xf32> to vector<8x8xf32>
    %79 = vector.shape_cast %78 : vector<8x8xf32> to vector<1x8x8xf32>
    "tpu.trace_start"() <{level = 10 : i32, message = "bqd,bkd->bqk"}> : () -> ()
    %cst_26 = arith.constant dense<0.000000e+00> : vector<1x8x8xf32>
    %80 = tpu.matmul %75, %77, %cst_26 {dimension_numbers = #tpu.dot_dimension_numbers<[2], [2], [1], [1], [0, 0, 0, 1, 1, 1], [0], [0]>} : vector<1x8x8xf32>, vector<1x8x8xf32>, vector<1x8x8xf32> -> vector<1x8x8xf32>
    "tpu.trace_stop"() : () -> ()
    %cst_27 = arith.constant dense<0xFF800000> : vector<1x8xf32>
    %81 = vector.multi_reduction <maximumf>, %80, %cst_27 [2] : vector<1x8x8xf32> to vector<1x8xf32>
    %82 = vector.shape_cast %81 : vector<1x8xf32> to vector<1x8x1xf32>
    %83 = vector.broadcast %82 : vector<1x8x1xf32> to vector<1x8x8xf32>
    %84 = arith.subf %80, %83 : vector<1x8x8xf32>
    %85 = math.exp %84 : vector<1x8x8xf32>
    %cst_28 = arith.constant dense<0.000000e+00> : vector<1x8xf32>
    %86 = vector.multi_reduction <add>, %85, %cst_28 [2] : vector<1x8x8xf32> to vector<1x8xf32>
    %87 = vector.shape_cast %86 : vector<1x8xf32> to vector<1x8x1xf32>
    %88 = tpu.reciprocal %87 : vector<1x8x1xf32> -> vector<1x8x1xf32>
    %89 = vector.broadcast %88 : vector<1x8x1xf32> to vector<1x8x8xf32>
    %90 = arith.mulf %85, %89 : vector<1x8x8xf32>
    %91 = arith.mulf %90, %1 : vector<1x8x8xf32>
    "tpu.trace_start"() <{level = 10 : i32, message = "bqk,bkd->bqd"}> : () -> ()
    %cst_29 = arith.constant dense<0.000000e+00> : vector<1x8x8xf32>
    %92 = tpu.matmul %91, %79, %cst_29 {dimension_numbers = #tpu.dot_dimension_numbers<[2], [1], [1], [2], [0, 0, 0, 1, 1, 2], [0], [0]>} : vector<1x8x8xf32>, vector<1x8x8xf32>, vector<1x8x8xf32> -> vector<1x8x8xf32>
    "tpu.trace_stop"() : () -> ()
    %93 = vector.shape_cast %92 : vector<1x8x8xf32> to vector<8x8xf32>
    %94 = tpu.concatenate %33, %53, %73, %93 in 1 : vector<8x8xf32>, vector<8x8xf32>, vector<8x8xf32>, vector<8x8xf32> -> vector<8x32xf32>
    %c0_30 = arith.constant 0 : index
    %c0_31 = arith.constant 0 : index
    %95 = vector.load %arg12[%c0_30, %c0_31] : memref<32x32xf32, #tpu.memory_space<vmem>>, vector<32x32xf32>
    %cst_32 = arith.constant dense<0.000000e+00> : vector<8x32xf32>
    %96 = tpu.matmul %94, %95, %cst_32 {dimension_numbers = #tpu.dot_dimension_numbers<[1], [0], [0], [1], [0, 0, 1, 1], [], []>} : vector<8x32xf32>, vector<32x32xf32>, vector<8x32xf32> -> vector<8x32xf32>
    %c0_33 = arith.constant 0 : index
    %c0_34 = arith.constant 0 : index
    %97 = vector.load %arg13[%c0_33, %c0_34] : memref<1x32xf32, #tpu.memory_space<vmem>>, vector<1x32xf32>
    %98 = vector.broadcast %97 : vector<1x32xf32> to vector<8x32xf32>
    %99 = arith.addf %96, %98 : vector<8x32xf32>
    %100 = vector.shape_cast %99 : vector<8x32xf32> to vector<1x8x32xf32>
    %c0_35 = arith.constant 0 : index
    %c0_36 = arith.constant 0 : index
    %c0_37 = arith.constant 0 : index
    %101 = vector.load %arg14[%c0_35, %c0_36, %c0_37] : memref<1x8x32xf32, #tpu.memory_space<vmem>>, vector<1x8x32xf32>
    tpu.vector_store %arg14[%c0_35, %c0_36, %c0_37], %100 {strides = array<i32>} : memref<1x8x32xf32, #tpu.memory_space<vmem>>, vector<1x8x32xf32>,
    return
  }
  func.func @transform_0(%arg0: i32, %arg1: i32) -> (i32, i32, i32) {
    %c0_i32 = arith.constant 0 : i32
    %c0_i32_0 = arith.constant 0 : i32
    return %arg0, %arg1, %c0_i32 : i32, i32, i32
  }
  func.func @transform_1(%arg0: i32, %arg1: i32) -> (i32, i32, i32) {
    %c0_i32 = arith.constant 0 : i32
    %c0_i32_0 = arith.constant 0 : i32
    return %arg0, %arg1, %c0_i32 : i32, i32, i32
  }
  func.func @transform_2(%arg0: i32, %arg1: i32) -> (i32, i32, i32) {
    %c0_i32 = arith.constant 0 : i32
    %c0_i32_0 = arith.constant 0 : i32
    %c0_i32_1 = arith.constant 0 : i32
    return %arg0, %c0_i32, %c0_i32_0 : i32, i32, i32
  }
  func.func @transform_3(%arg0: i32, %arg1: i32) -> (i32, i32, i32) {
    %c0_i32 = arith.constant 0 : i32
    %c0_i32_0 = arith.constant 0 : i32
    %c0_i32_1 = arith.constant 0 : i32
    return %arg0, %c0_i32, %c0_i32_0 : i32, i32, i32
  }
  func.func @transform_4(%arg0: i32, %arg1: i32) -> (i32, i32) {
    %c0_i32 = arith.constant 0 : i32
    %c0_i32_0 = arith.constant 0 : i32
    %c0_i32_1 = arith.constant 0 : i32
    return %c0_i32, %c0_i32_0 : i32, i32
  }
  func.func @transform_5(%arg0: i32, %arg1: i32) -> (i32, i32) {
    %c0_i32 = arith.constant 0 : i32
    %c0_i32_0 = arith.constant 0 : i32
    %c0_i32_1 = arith.constant 0 : i32
    return %c0_i32, %c0_i32_0 : i32, i32
  }
  func.func @transform_6(%arg0: i32, %arg1: i32) -> (i32, i32) {
    %c0_i32 = arith.constant 0 : i32
    %c0_i32_0 = arith.constant 0 : i32
    %c0_i32_1 = arith.constant 0 : i32
    return %c0_i32, %c0_i32_0 : i32, i32
  }
  func.func @transform_7(%arg0: i32, %arg1: i32) -> (i32, i32) {
    %c0_i32 = arith.constant 0 : i32
    %c0_i32_0 = arith.constant 0 : i32
    %c0_i32_1 = arith.constant 0 : i32
    return %c0_i32, %c0_i32_0 : i32, i32
  }
  func.func @transform_8(%arg0: i32, %arg1: i32) -> (i32, i32) {
    %c0_i32 = arith.constant 0 : i32
    %c0_i32_0 = arith.constant 0 : i32
    %c0_i32_1 = arith.constant 0 : i32
    return %c0_i32, %c0_i32_0 : i32, i32
  }
  func.func @transform_9(%arg0: i32, %arg1: i32) -> (i32, i32) {
    %c0_i32 = arith.constant 0 : i32
    %c0_i32_0 = arith.constant 0 : i32
    %c0_i32_1 = arith.constant 0 : i32
    return %c0_i32, %c0_i32_0 : i32, i32
  }
  func.func @transform_10(%arg0: i32, %arg1: i32) -> (i32, i32) {
    %c0_i32 = arith.constant 0 : i32
    %c0_i32_0 = arith.constant 0 : i32
    %c0_i32_1 = arith.constant 0 : i32
    return %c0_i32, %c0_i32_0 : i32, i32
  }
  func.func @transform_11(%arg0: i32, %arg1: i32) -> (i32, i32) {
    %c0_i32 = arith.constant 0 : i32
    %c0_i32_0 = arith.constant 0 : i32
    %c0_i32_1 = arith.constant 0 : i32
    return %c0_i32, %c0_i32_0 : i32, i32
  }
  func.func @transform_12(%arg0: i32, %arg1: i32) -> (i32, i32, i32) {
    %c0_i32 = arith.constant 0 : i32
    %c0_i32_0 = arith.constant 0 : i32
    return %arg0, %arg1, %c0_i32 : i32, i32, i32
  }
}

</mosaic_0001>

<llo_original>
// kernel: tpu_custom_call.1
$region0: #{tpu_custom_call.1}
  #allocation0 [shape = 'u32[]', space=smem, size = 0x4, offset = 0x4, fixed_abs, tag = 'smem constant byte address 0x4 - core index']
  #allocation1 [shape = 'u32[144,128]{1,0:T(1,128)}', space=vmem, size = 0x12000, scoped, tag = 'internal scratch']
  #allocation2 [shape = 'f32[8,32]{1,0:T(8,128)}', space=vmem, size = 0x1000, scoped, tag = 'scratch operand']
  #allocation3 [shape = 'f32[8,32]{1,0:T(8,128)}', space=vmem, size = 0x1000, scoped, tag = 'scratch operand']
  %s0 = inlined_call_operand.hbm [shape: bf16[2,8,8], index: 0, kind: input, shape index: {}]
  %s1 = inlined_call_operand.hbm [shape: f32[2,8,32], index: 1, kind: input, shape index: {}]
  %s2 = inlined_call_operand.hbm [shape: f32[2,8,32], index: 2, kind: input, shape index: {}]
  %s3 = inlined_call_operand.hbm [shape: f32[2,8,32], index: 3, kind: input, shape index: {}]
  %s4 = inlined_call_operand.hbm [shape: f32[32,32], index: 4, kind: input, shape index: {}]
  %s5 = inlined_call_operand.vmem [shape: f32[1,32], index: 5, kind: input, shape index: {}]
  %s6 = inlined_call_operand.hbm [shape: f32[32,32], index: 6, kind: input, shape index: {}]
  %s7 = inlined_call_operand.vmem [shape: f32[1,32], index: 7, kind: input, shape index: {}]
  %s8 = inlined_call_operand.hbm [shape: f32[32,32], index: 8, kind: input, shape index: {}]
  %s9 = inlined_call_operand.vmem [shape: f32[1,32], index: 9, kind: input, shape index: {}]
  %s10 = inlined_call_operand.vmem [shape: f32[32,32], index: 10, kind: input, shape index: {}]
  %s11 = inlined_call_operand.vmem [shape: f32[1,32], index: 11, kind: input, shape index: {}]
  %s12 = inlined_call_operand.hbm [shape: f32[2,8,32], index: 12, kind: output, shape index: {}]
  %s13 = sld [smem:[#allocation0]]
  $region113: #{tpu_custom_call.1} parent=0
    _
  %s15 = ssub.s32 1, %s13
  %s16 = scalar_select 0, %s15, %s13
  $region1: #{tpu_custom_call.1} parent=0
    #allocation4 [shape = 'u8[4096]{0}', space=vmem, size = 0x1000, scoped, tag = 'input window, operand 0']
    #allocation5 [shape = 's32[2]{0}', space=sflag, size = 0x8, scoped, tag = 'scoped memory for tpu_custom_call.1']
    #allocation6 [shape = 's32[2]{0}', space=sflag, size = 0x8, scoped, tag = 'scoped memory for tpu_custom_call.1']
    #allocation7 [shape = 'u8[8192]{0}', space=vmem, size = 0x2000, scoped, tag = 'input window, operand 1']
    #allocation8 [shape = 's32[2]{0}', space=sflag, size = 0x8, scoped, tag = 'scoped memory for tpu_custom_call.1']
    #allocation9 [shape = 'u8[8192]{0}', space=vmem, size = 0x2000, scoped, tag = 'input window, operand 2']
    #allocation10 [shape = 'u8[8192]{0}', space=vmem, size = 0x2000, scoped, tag = 'input window, operand 3']
    #allocation11 [shape = 's32[2]{0}', space=sflag, size = 0x8, scoped, tag = 'scoped memory for tpu_custom_call.1']
    #allocation12 [shape = 'u8[16384]{0}', space=vmem, size = 0x4000, scoped, tag = 'input window, operand 4, single buffered']
    #allocation13 [shape = 'u8[16384]{0}', space=vmem, size = 0x4000, scoped, tag = 'input window, operand 6, single buffered']
    #allocation14 [shape = 's32[1]{0}', space=sflag, size = 0x4, scoped, tag = 'scoped memory for tpu_custom_call.1']
    #allocation15 [shape = 'u8[16384]{0}', space=vmem, size = 0x4000, scoped, tag = 'input window, operand 8, single buffered']
    #allocation16 [shape = 'u8[8192]{0}', space=vmem, size = 0x2000, scoped, tag = 'output window, operand 0']
    %17 = vsyncpa [#allocation5], 0
    %s18 = scalar_lea.sflag [#allocation5], 1
    %19 = vsyncpa %s18, 0
    %20 = vsyncpa [#allocation8], 0
    %s21 = scalar_lea.sflag [#allocation8], 1
    %22 = vsyncpa %s21, 0
    %23 = vsyncpa [#allocation11], 0
    %s24 = scalar_lea.sflag [#allocation11], 1
    %25 = vsyncpa %s24, 0
    %26 = vsyncpa [#allocation14], 0
    %27 = vsyncpa [#allocation6], 0
    %s28 = scalar_lea.sflag [#allocation6], 1
    %29 = vsyncpa %s28, 0
    loop: start=0, step=1, limit=4
    $region2: #{tpu_custom_call.1} parent=1 // loop_pre_header
      _
    $region3: #{tpu_custom_call.1} parent=1 // loop_header
      %s31 = sphi 0, %s35
      %p32 = scmp.ge.s32.totalorder %s31, 4
      %s38 = sphi 0, %s50
      %s39 = sphi 0, %s46
      %s40 = sphi 0, %s38
      %s41 = sphi 0, %s39
      %s42 = sphi 0, %s40
      %s43 = sphi 0, %s41
      %s55 = sphi 0, %s57
      %s58 = sphi 0, %s55
      %s59 = sphi 0, %s58
      %s75 = sphi 0, %s59
      %s83 = sphi 0, %s85
      %s86 = sphi 0, %s83
      %s87 = sphi 0, %s86
      %s103 = sphi 0, %s87
      %s109 = sphi 0, %s111
      %s112 = sphi 0, %s109
      %s113 = sphi 0, %s112
      %s129 = sphi 0, %s113
      %s135 = sphi 0, %s137
      %s138 = sphi 0, %s135
      %s139 = sphi 0, %s138
      %s155 = sphi 0, %s139
      %s159 = sphi 0, %s159
      %s161 = sphi 0, %s159
      %s162 = sphi 0, %s161
      %s176 = sphi 0, %s162
      %s180 = sphi 0, %s180
      %s182 = sphi 0, %s180
      %s183 = sphi 0, %s182
      %s197 = sphi 0, %s183
      %s201 = sphi 0, %s201
      %s203 = sphi 0, %s201
      %s204 = sphi 0, %s203
      %s218 = sphi 0, %s204
      %s222 = sphi 0, %s222
      %s224 = sphi 0, %s222
      %s225 = sphi 0, %s224
      %s239 = sphi 0, %s225
      %s243 = sphi 0, %s243
      %s245 = sphi 0, %s243
      %s246 = sphi 0, %s245
      %s260 = sphi 0, %s246
      %s264 = sphi 0, %s264
      %s266 = sphi 0, %s264
      %s267 = sphi 0, %s266
      %s281 = sphi 0, %s267
      %s285 = sphi 0, %s285
      %s287 = sphi 0, %s285
      %s288 = sphi 0, %s287
      %s302 = sphi 0, %s288
      %s306 = sphi 0, %s306
      %s308 = sphi 0, %s306
      %s309 = sphi 0, %s308
      %s323 = sphi 0, %s309
      %s331 = sphi 0, %s333
      %s334 = sphi 0, %s331
      %s335 = sphi 0, %s334
      %s351 = sphi 0, %s335
    $region4: #{tpu_custom_call.1} parent=1 // loop_header_branch
      %34 = sbr.rel (%p32) target = $region8
    $region5: #{tpu_custom_call.1} parent=1 // loop_body
      %s36 = ssub.s32 %s31, 1
      %s37 = ssub.s32 %s31, 2
      %s44 = sadd.s32 1, %s39
      %p45 = scmp.ge.s32.totalorder %s44, 1
      %s46 = scalar_select %p45, 0, %s44
      %s47 = sadd.s32 1, %s38
      %s48 = scalar_select %p45, %s47, %s38
      %p49 = scmp.ge.s32.totalorder %s48, 2
      %s50 = scalar_select %p49, 0, %s48
      %s51 = ssub.s32 %s38, %s50
      %s52 = ssub.s32 %s39, %s46
      %s53 = sor.u32 %s51, %s52
      %p54 = scmp.eq.s32.totalorder %s53, 0
      %s56 = sadd.s32 %s55, 1
      %s57 = scalar_select %p54, %s55, %s56
      %p60 = pneg %p54
      %p61 = scmp.eq.s32.totalorder %s31, 1
      %p62 = por %p60, %p61
      %p63 = scmp.ne.s32.totalorder %s55, %s58
      %p64 = scmp.eq.s32.totalorder %s31, 0
      %p65 = por %p63, %p64
      %p66 = scmp.ne.s32.totalorder %s55, %s58
      %p67 = scmp.eq.s32.totalorder %s36, 1
      %p68 = por %p66, %p67
      %p69 = scmp.ne.s32.totalorder %s58, %s59
      %p70 = scmp.eq.s32.totalorder %s36, 0
      %p71 = por %p69, %p70
      %p72 = scmp.ne.s32.totalorder %s58, %s59
      %p73 = scmp.eq.s32.totalorder %s37, 1
      %p74 = por %p72, %p73
      %p76 = scmp.ne.s32.totalorder %s59, %s75
      %p77 = scmp.eq.s32.totalorder %s37, 0
      %p78 = por %p76, %p77
      %s79 = ssub.s32 %s38, %s50
      %s80 = ssub.s32 %s39, %s46
      %s81 = sor.u32 %s79, %s80
      %p82 = scmp.eq.s32.totalorder %s81, 0
      %s84 = sadd.s32 %s83, 1
      %s85 = scalar_select %p82, %s83, %s84
      %p88 = pneg %p82
      %p89 = scmp.eq.s32.totalorder %s31, 1
      %p90 = por %p88, %p89
      %p91 = scmp.ne.s32.totalorder %s83, %s86
      %p92 = scmp.eq.s32.totalorder %s31, 0
      %p93 = por %p91, %p92
      %p94 = scmp.ne.s32.totalorder %s83, %s86
      %p95 = scmp.eq.s32.totalorder %s36, 1
      %p96 = por %p94, %p95
      %p97 = scmp.ne.s32.totalorder %s86, %s87
      %p98 = scmp.eq.s32.totalorder %s36, 0
      %p99 = por %p97, %p98
      %p100 = scmp.ne.s32.totalorder %s86, %s87
      %p101 = scmp.eq.s32.totalorder %s37, 1
      %p102 = por %p100, %p101
      %p104 = scmp.ne.s32.totalorder %s87, %s103
      %p105 = scmp.eq.s32.totalorder %s37, 0
      %p106 = por %p104, %p105
      %s107 = ssub.s32 %s38, %s50
      %p108 = scmp.eq.s32.totalorder %s107, 0
      %s110 = sadd.s32 %s109, 1
      %s111 = scalar_select %p108, %s109, %s110
      %p114 = pneg %p108
      %p115 = scmp.eq.s32.totalorder %s31, 1
      %p116 = por %p114, %p115
      %p117 = scmp.ne.s32.totalorder %s109, %s112
      %p118 = scmp.eq.s32.totalorder %s31, 0
      %p119 = por %p117, %p118
      %p120 = scmp.ne.s32.totalorder %s109, %s112
      %p121 = scmp.eq.s32.totalorder %s36, 1
      %p122 = por %p120, %p121
      %p123 = scmp.ne.s32.totalorder %s112, %s113
      %p124 = scmp.eq.s32.totalorder %s36, 0
      %p125 = por %p123, %p124
      %p126 = scmp.ne.s32.totalorder %s112, %s113
      %p127 = scmp.eq.s32.totalorder %s37, 1
      %p128 = por %p126, %p127
      %p130 = scmp.ne.s32.totalorder %s113, %s129
      %p131 = scmp.eq.s32.totalorder %s37, 0
      %p132 = por %p130, %p131
      %s133 = ssub.s32 %s38, %s50
      %p134 = scmp.eq.s32.totalorder %s133, 0
      %s136 = sadd.s32 %s135, 1
      %s137 = scalar_select %p134, %s135, %s136
      %p140 = pneg %p134
      %p141 = scmp.eq.s32.totalorder %s31, 1
      %p142 = por %p140, %p141
      %p143 = scmp.ne.s32.totalorder %s135, %s138
      %p144 = scmp.eq.s32.totalorder %s31, 0
      %p145 = por %p143, %p144
      %p146 = scmp.ne.s32.totalorder %s135, %s138
      %p147 = scmp.eq.s32.totalorder %s36, 1
      %p148 = por %p146, %p147
      %p149 = scmp.ne.s32.totalorder %s138, %s139
      %p150 = scmp.eq.s32.totalorder %s36, 0
      %p151 = por %p149, %p150
      %p152 = scmp.ne.s32.totalorder %s138, %s139
      %p153 = scmp.eq.s32.totalorder %s37, 1
      %p154 = por %p152, %p153
      %p156 = scmp.ne.s32.totalorder %s139, %s155
      %p157 = scmp.eq.s32.totalorder %s37, 0
      %p158 = por %p156, %p157
      %s160 = sadd.s32 %s159, 1
      %p163 = scmp.eq.s32.totalorder %s31, 1
      %p164 = scmp.ne.s32.totalorder %s159, %s161
      %p165 = scmp.eq.s32.totalorder %s31, 0
      %p166 = por %p164, %p165
      %p167 = scmp.ne.s32.totalorder %s159, %s161
      %p168 = scmp.eq.s32.totalorder %s36, 1
      %p169 = por %p167, %p168
      %p170 = scmp.ne.s32.totalorder %s161, %s162
      %p171 = scmp.eq.s32.totalorder %s36, 0
      %p172 = por %p170, %p171
      %p173 = scmp.ne.s32.totalorder %s161, %s162
      %p174 = scmp.eq.s32.totalorder %s37, 1
      %p175 = por %p173, %p174
      %p177 = scmp.ne.s32.totalorder %s162, %s176
      %p178 = scmp.eq.s32.totalorder %s37, 0
      %p179 = por %p177, %p178
      %s181 = sadd.s32 %s180, 1
      %p184 = scmp.eq.s32.totalorder %s31, 1
      %p185 = scmp.ne.s32.totalorder %s180, %s182
      %p186 = scmp.eq.s32.totalorder %s31, 0
      %p187 = por %p185, %p186
      %p188 = scmp.ne.s32.totalorder %s180, %s182
      %p189 = scmp.eq.s32.totalorder %s36, 1
      %p190 = por %p188, %p189
      %p191 = scmp.ne.s32.totalorder %s182, %s183
      %p192 = scmp.eq.s32.totalorder %s36, 0
      %p193 = por %p191, %p192
      %p194 = scmp.ne.s32.totalorder %s182, %s183
      %p195 = scmp.eq.s32.totalorder %s37, 1
      %p196 = por %p194, %p195
      %p198 = scmp.ne.s32.totalorder %s183, %s197
      %p199 = scmp.eq.s32.totalorder %s37, 0
      %p200 = por %p198, %p199
      %s202 = sadd.s32 %s201, 1
      %p205 = scmp.eq.s32.totalorder %s31, 1
      %p206 = scmp.ne.s32.totalorder %s201, %s203
      %p207 = scmp.eq.s32.totalorder %s31, 0
      %p208 = por %p206, %p207
      %p209 = scmp.ne.s32.totalorder %s201, %s203
      %p210 = scmp.eq.s32.totalorder %s36, 1
      %p211 = por %p209, %p210
      %p212 = scmp.ne.s32.totalorder %s203, %s204
      %p213 = scmp.eq.s32.totalorder %s36, 0
      %p214 = por %p212, %p213
      %p215 = scmp.ne.s32.totalorder %s203, %s204
      %p216 = scmp.eq.s32.totalorder %s37, 1
      %p217 = por %p215, %p216
      %p219 = scmp.ne.s32.totalorder %s204, %s218
      %p220 = scmp.eq.s32.totalorder %s37, 0
      %p221 = por %p219, %p220
      %s223 = sadd.s32 %s222, 1
      %p226 = scmp.eq.s32.totalorder %s31, 1
      %p227 = scmp.ne.s32.totalorder %s222, %s224
      %p228 = scmp.eq.s32.totalorder %s31, 0
      %p229 = por %p227, %p228
      %p230 = scmp.ne.s32.totalorder %s222, %s224
      %p231 = scmp.eq.s32.totalorder %s36, 1
      %p232 = por %p230, %p231
      %p233 = scmp.ne.s32.totalorder %s224, %s225
      %p234 = scmp.eq.s32.totalorder %s36, 0
      %p235 = por %p233, %p234
      %p236 = scmp.ne.s32.totalorder %s224, %s225
      %p237 = scmp.eq.s32.totalorder %s37, 1
      %p238 = por %p236, %p237
      %p240 = scmp.ne.s32.totalorder %s225, %s239
      %p241 = scmp.eq.s32.totalorder %s37, 0
      %p242 = por %p240, %p241
      %s244 = sadd.s32 %s243, 1
      %p247 = scmp.eq.s32.totalorder %s31, 1
      %p248 = scmp.ne.s32.totalorder %s243, %s245
      %p249 = scmp.eq.s32.totalorder %s31, 0
      %p250 = por %p248, %p249
      %p251 = scmp.ne.s32.totalorder %s243, %s245
      %p252 = scmp.eq.s32.totalorder %s36, 1
      %p253 = por %p251, %p252
      %p254 = scmp.ne.s32.totalorder %s245, %s246
      %p255 = scmp.eq.s32.totalorder %s36, 0
      %p256 = por %p254, %p255
      %p257 = scmp.ne.s32.totalorder %s245, %s246
      %p258 = scmp.eq.s32.totalorder %s37, 1
      %p259 = por %p257, %p258
      %p261 = scmp.ne.s32.totalorder %s246, %s260
      %p262 = scmp.eq.s32.totalorder %s37, 0
      %p263 = por %p261, %p262
      %s265 = sadd.s32 %s264, 1
      %p268 = scmp.eq.s32.totalorder %s31, 1
      %p269 = scmp.ne.s32.totalorder %s264, %s266
      %p270 = scmp.eq.s32.totalorder %s31, 0
      %p271 = por %p269, %p270
      %p272 = scmp.ne.s32.totalorder %s264, %s266
      %p273 = scmp.eq.s32.totalorder %s36, 1
      %p274 = por %p272, %p273
      %p275 = scmp.ne.s32.totalorder %s266, %s267
      %p276 = scmp.eq.s32.totalorder %s36, 0
      %p277 = por %p275, %p276
      %p278 = scmp.ne.s32.totalorder %s266, %s267
      %p279 = scmp.eq.s32.totalorder %s37, 1
      %p280 = por %p278, %p279
      %p282 = scmp.ne.s32.totalorder %s267, %s281
      %p283 = scmp.eq.s32.totalorder %s37, 0
      %p284 = por %p282, %p283
      %s286 = sadd.s32 %s285, 1
      %p289 = scmp.eq.s32.totalorder %s31, 1
      %p290 = scmp.ne.s32.totalorder %s285, %s287
      %p291 = scmp.eq.s32.totalorder %s31, 0
      %p292 = por %p290, %p291
      %p293 = scmp.ne.s32.totalorder %s285, %s287
      %p294 = scmp.eq.s32.totalorder %s36, 1
      %p295 = por %p293, %p294
      %p296 = scmp.ne.s32.totalorder %s287, %s288
      %p297 = scmp.eq.s32.totalorder %s36, 0
      %p298 = por %p296, %p297
      %p299 = scmp.ne.s32.totalorder %s287, %s288
      %p300 = scmp.eq.s32.totalorder %s37, 1
      %p301 = por %p299, %p300
      %p303 = scmp.ne.s32.totalorder %s288, %s302
      %p304 = scmp.eq.s32.totalorder %s37, 0
      %p305 = por %p303, %p304
      %s307 = sadd.s32 %s306, 1
      %p310 = scmp.eq.s32.totalorder %s31, 1
      %p311 = scmp.ne.s32.totalorder %s306, %s308
      %p312 = scmp.eq.s32.totalorder %s31, 0
      %p313 = por %p311, %p312
      %p314 = scmp.ne.s32.totalorder %s306, %s308
      %p315 = scmp.eq.s32.totalorder %s36, 1
      %p316 = por %p314, %p315
      %p317 = scmp.ne.s32.totalorder %s308, %s309
      %p318 = scmp.eq.s32.totalorder %s36, 0
      %p319 = por %p317, %p318
      %p320 = scmp.ne.s32.totalorder %s308, %s309
      %p321 = scmp.eq.s32.totalorder %s37, 1
      %p322 = por %p320, %p321
      %p324 = scmp.ne.s32.totalorder %s309, %s323
      %p325 = scmp.eq.s32.totalorder %s37, 0
      %p326 = por %p324, %p325
      %s327 = ssub.s32 %s38, %s50
      %s328 = ssub.s32 %s39, %s46
      %s329 = sor.u32 %s327, %s328
      %p330 = scmp.eq.s32.totalorder %s329, 0
      %s332 = sadd.s32 %s331, 1
      %s333 = scalar_select %p330, %s331, %s332
      %p336 = pneg %p330
      %p337 = scmp.eq.s32.totalorder %s31, 1
      %p338 = por %p336, %p337
      %p339 = scmp.ne.s32.totalorder %s331, %s334
      %p340 = scmp.eq.s32.totalorder %s31, 0
      %p341 = por %p339, %p340
      %p342 = scmp.ne.s32.totalorder %s331, %s334
      %p343 = scmp.eq.s32.totalorder %s36, 1
      %p344 = por %p342, %p343
      %p345 = scmp.ne.s32.totalorder %s334, %s335
      %p346 = scmp.eq.s32.totalorder %s36, 0
      %p347 = por %p345, %p346
      %p348 = scmp.ne.s32.totalorder %s334, %s335
      %p349 = scmp.eq.s32.totalorder %s37, 1
      %p350 = por %p348, %p349
      %p352 = scmp.ne.s32.totalorder %s335, %s351
      %p353 = scmp.eq.s32.totalorder %s37, 0
      %p354 = por %p352, %p353
      %p355 = scmp.le.s32.totalorder 1, %s31
      %p356 = scmp.lt.s32.totalorder %s31, 3
      %p357 = pnand %p355, %p356
      %p358 = pneg %p357
      // Predicated region
      $region9: #{tpu_custom_call.1} parent=5 // pred_check
        _
      $region10: #{tpu_custom_call.1} parent=5 // pred_check_branch
        %360 = sbr.rel (%p357) target = $region12
      $region11: #{tpu_custom_call.1} parent=5 // pred_region
        %s361 = ssub.s32 %s31, 1
        // Predicated region
        $region13: #{tpu_custom_call.1} parent=11 // pred_check
          %p362 = pneg %p172
        $region14: #{tpu_custom_call.1} parent=11 // pred_check_branch
          %364 = sbr.rel (%p362) target = $region16
        $region15: #{tpu_custom_call.1} parent=11 // pred_region
          %s366 = ssub.s32 512, 512
          %367 = vsyncadd [#allocation11], %s366
          %s368 = sshll.u32 [#allocation12], 4
          %s369 = int_to_ptr.vmem [resolvable:$true] %s368
          %374 = dma.hbm_to_vmem [thread:$0]  %s4, 512, %s369, [#allocation11], 128, 128, 8
        $region16: #{tpu_custom_call.1} parent=11 // pred_fallthru
          _
        // Predicated region
        $region17: #{tpu_custom_call.1} parent=11 // pred_check
          %p375 = pneg %p193
        $region18: #{tpu_custom_call.1} parent=11 // pred_check_branch
          %377 = sbr.rel (%p375) target = $region20
        $region19: #{tpu_custom_call.1} parent=11 // pred_region
          _
        $region20: #{tpu_custom_call.1} parent=11 // pred_fallthru
          _
        // Predicated region
        $region21: #{tpu_custom_call.1} parent=11 // pred_check
          %p378 = pneg %p214
        $region22: #{tpu_custom_call.1} parent=11 // pred_check_branch
          %380 = sbr.rel (%p378) target = $region24
        $region23: #{tpu_custom_call.1} parent=11 // pred_region
          %s382 = ssub.s32 512, 512
          %383 = vsyncadd [#allocation14], %s382
          %s384 = sshll.u32 [#allocation13], 4
          %s385 = int_to_ptr.vmem [resolvable:$true] %s384
          %390 = dma.hbm_to_vmem [thread:$0]  %s6, 512, %s385, [#allocation14], 128, 128, 8
        $region24: #{tpu_custom_call.1} parent=11 // pred_fallthru
          _
        // Predicated region
        $region25: #{tpu_custom_call.1} parent=11 // pred_check
          %p391 = pneg %p235
        $region26: #{tpu_custom_call.1} parent=11 // pred_check_branch
          %393 = sbr.rel (%p391) target = $region28
        $region27: #{tpu_custom_call.1} parent=11 // pred_region
          _
        $region28: #{tpu_custom_call.1} parent=11 // pred_fallthru
          _
        // Predicated region
        $region29: #{tpu_custom_call.1} parent=11 // pred_check
          %p394 = pneg %p256
        $region30: #{tpu_custom_call.1} parent=11 // pred_check_branch
          %396 = sbr.rel (%p394) target = $region32
        $region31: #{tpu_custom_call.1} parent=11 // pred_region
          %s398 = ssub.s32 512, 512
          %399 = vsyncadd [#allocation14], %s398
          %s400 = sshll.u32 [#allocation15], 4
          %s401 = int_to_ptr.vmem [resolvable:$true] %s400
          %406 = dma.hbm_to_vmem [thread:$0]  %s8, 512, %s401, [#allocation14], 128, 128, 8
        $region32: #{tpu_custom_call.1} parent=11 // pred_fallthru
          _
        // Predicated region
        $region33: #{tpu_custom_call.1} parent=11 // pred_check
          %p407 = pneg %p277
        $region34: #{tpu_custom_call.1} parent=11 // pred_check_branch
          %409 = sbr.rel (%p407) target = $region36
        $region35: #{tpu_custom_call.1} parent=11 // pred_region
          _
        $region36: #{tpu_custom_call.1} parent=11 // pred_fallthru
          _
        // Predicated region
        $region37: #{tpu_custom_call.1} parent=11 // pred_check
          %p410 = pneg %p298
        $region38: #{tpu_custom_call.1} parent=11 // pred_check_branch
          %412 = sbr.rel (%p410) target = $region40
        $region39: #{tpu_custom_call.1} parent=11 // pred_region
          _
        $region40: #{tpu_custom_call.1} parent=11 // pred_fallthru
          _
        // Predicated region
        $region41: #{tpu_custom_call.1} parent=11 // pred_check
          %p413 = pneg %p319
        $region42: #{tpu_custom_call.1} parent=11 // pred_check_branch
          %415 = sbr.rel (%p413) target = $region44
        $region43: #{tpu_custom_call.1} parent=11 // pred_region
          _
        $region44: #{tpu_custom_call.1} parent=11 // pred_fallthru
          _
      $region12: #{tpu_custom_call.1} parent=5 // pred_fallthru
        _
      %p416 = scmp.lt.s32.totalorder %s31, 2
      // Predicated region
      $region45: #{tpu_custom_call.1} parent=5 // pred_check
        %p417 = pneg %p416
      $region46: #{tpu_custom_call.1} parent=5 // pred_check_branch
        %419 = sbr.rel (%p417) target = $region48
      $region47: #{tpu_custom_call.1} parent=5 // pred_region
        // Predicated region
        $region49: #{tpu_custom_call.1} parent=47 // pred_check
          %p420 = pneg %p65
        $region50: #{tpu_custom_call.1} parent=47 // pred_check_branch
          %422 = sbr.rel (%p420) target = $region52
        $region51: #{tpu_custom_call.1} parent=47 // pred_region
          %s423 = sand.u32 %s55, 1
          %s424 = scalar_lea.sflag [#allocation5], %s423
          %s425 = sand.u32 %s55, 1
          %s426 = smul.addr %s425, 4
          %s427 = scalar_lea.vmem [#allocation4], %s426
          %s429 = ssub.s32 64, 64
          %430 = vsyncadd %s424, %s429
          %s431 = sadd.s32 %s39, %s38
          %s432 = smul.addr %s431, 64
          %s433 = scalar_lea.hbm %s0, %s432
          %s435 = sshll.u32 %s427, 4
          %s436 = int_to_ptr.vmem [resolvable:$true] %s435
          %438 = dma.hbm_to_vmem [thread:$0]  %s433, 64, %s436, %s424
        $region52: #{tpu_custom_call.1} parent=47 // pred_fallthru
          _
        // Predicated region
        $region53: #{tpu_custom_call.1} parent=47 // pred_check
          %p439 = pneg %p93
        $region54: #{tpu_custom_call.1} parent=47 // pred_check_branch
          %441 = sbr.rel (%p439) target = $region56
        $region55: #{tpu_custom_call.1} parent=47 // pred_region
          %s442 = sand.u32 %s31, 1
          %s443 = scalar_lea.sflag [#allocation8], %s442
          %s444 = sand.u32 %s83, 1
          %s445 = smul.addr %s444, 8
          %s446 = scalar_lea.vmem [#allocation7], %s445
          %s448 = ssub.s32 128, 128
          %449 = vsyncadd %s443, %s448
          %s450 = sadd.s32 %s39, %s38
          %s451 = smul.addr %s450, 128
          %s452 = scalar_lea.hbm %s1, %s451
          %s454 = sshll.u32 %s446, 4
          %s455 = int_to_ptr.vmem [resolvable:$true] %s454
          %457 = dma.hbm_to_vmem [thread:$0]  %s452, 128, %s455, %s443
        $region56: #{tpu_custom_call.1} parent=47 // pred_fallthru
          _
        // Predicated region
        $region57: #{tpu_custom_call.1} parent=47 // pred_check
          %p458 = pneg %p119
        $region58: #{tpu_custom_call.1} parent=47 // pred_check_branch
          %460 = sbr.rel (%p458) target = $region60
        $region59: #{tpu_custom_call.1} parent=47 // pred_region
          %s461 = sand.u32 %s31, 1
          %s462 = scalar_lea.sflag [#allocation8], %s461
          %s463 = sand.u32 %s109, 1
          %s464 = smul.addr %s463, 8
          %s465 = scalar_lea.vmem [#allocation9], %s464
          %s467 = ssub.s32 128, 128
          %468 = vsyncadd %s462, %s467
          %s469 = smul.addr %s38, 128
          %s470 = scalar_lea.hbm %s2, %s469
          %s472 = sshll.u32 %s465, 4
          %s473 = int_to_ptr.vmem [resolvable:$true] %s472
          %475 = dma.hbm_to_vmem [thread:$0]  %s470, 128, %s473, %s462
        $region60: #{tpu_custom_call.1} parent=47 // pred_fallthru
          _
        // Predicated region
        $region61: #{tpu_custom_call.1} parent=47 // pred_check
          %p476 = pneg %p145
        $region62: #{tpu_custom_call.1} parent=47 // pred_check_branch
          %478 = sbr.rel (%p476) target = $region64
        $region63: #{tpu_custom_call.1} parent=47 // pred_region
          %s479 = sand.u32 %s31, 1
          %s480 = scalar_lea.sflag [#allocation11], %s479
          %s481 = sand.u32 %s135, 1
          %s482 = smul.addr %s481, 8
          %s483 = scalar_lea.vmem [#allocation10], %s482
          %s485 = ssub.s32 128, 128
          %486 = vsyncadd %s480, %s485
          %s487 = smul.addr %s38, 128
          %s488 = scalar_lea.hbm %s3, %s487
          %s490 = sshll.u32 %s483, 4
          %s491 = int_to_ptr.vmem [resolvable:$true] %s490
          %493 = dma.hbm_to_vmem [thread:$0]  %s488, 128, %s491, %s480
        $region64: #{tpu_custom_call.1} parent=47 // pred_fallthru
          _
      $region48: #{tpu_custom_call.1} parent=5 // pred_fallthru
        _
      %p494 = scmp.le.s32.totalorder 1, %s31
      %p495 = scmp.lt.s32.totalorder %s31, 3
      %p496 = pnand %p494, %p495
      %p497 = pneg %p496
      // Predicated region
      $region65: #{tpu_custom_call.1} parent=5 // pred_check
        _
      $region66: #{tpu_custom_call.1} parent=5 // pred_check_branch
        %499 = sbr.rel (%p496) target = $region68
      $region67: #{tpu_custom_call.1} parent=5 // pred_region
        %s500 = ssub.s32 %s31, 1
        %s501 = sand.u32 %s58, 1
        %s502 = scalar_lea.sflag [#allocation5], %s501
        %s503 = sand.u32 %s58, 1
        %s504 = smul.addr %s503, 4
        %s505 = scalar_lea.vmem [#allocation4], %s504
        // Predicated region
        $region69: #{tpu_custom_call.1} parent=67 // pred_check
          %p506 = pneg %p71
        $region70: #{tpu_custom_call.1} parent=67 // pred_check_branch
          %508 = sbr.rel (%p506) target = $region72
        $region71: #{tpu_custom_call.1} parent=67 // pred_region
          %509 = dma.done %s502, 64
        $region72: #{tpu_custom_call.1} parent=67 // pred_fallthru
          _
        %s510 = sand.u32 %s36, 1
        %s511 = scalar_lea.sflag [#allocation8], %s510
        %s512 = sand.u32 %s86, 1
        %s513 = smul.addr %s512, 8
        %s514 = scalar_lea.vmem [#allocation7], %s513
        // Predicated region
        $region73: #{tpu_custom_call.1} parent=67 // pred_check
          %p515 = pneg %p99
        $region74: #{tpu_custom_call.1} parent=67 // pred_check_branch
          %517 = sbr.rel (%p515) target = $region76
        $region75: #{tpu_custom_call.1} parent=67 // pred_region
          %518 = dma.done %s511, 128
        $region76: #{tpu_custom_call.1} parent=67 // pred_fallthru
          _
        %s519 = sand.u32 %s36, 1
        %s520 = scalar_lea.sflag [#allocation8], %s519
        %s521 = sand.u32 %s112, 1
        %s522 = smul.addr %s521, 8
        %s523 = scalar_lea.vmem [#allocation9], %s522
        // Predicated region
        $region77: #{tpu_custom_call.1} parent=67 // pred_check
          %p524 = pneg %p125
        $region78: #{tpu_custom_call.1} parent=67 // pred_check_branch
          %526 = sbr.rel (%p524) target = $region80
        $region79: #{tpu_custom_call.1} parent=67 // pred_region
          %527 = dma.done %s520, 128
        $region80: #{tpu_custom_call.1} parent=67 // pred_fallthru
          _
        %s528 = sand.u32 %s36, 1
        %s529 = scalar_lea.sflag [#allocation11], %s528
        %s530 = sand.u32 %s138, 1
        %s531 = smul.addr %s530, 8
        %s532 = scalar_lea.vmem [#allocation10], %s531
        // Predicated region
        $region81: #{tpu_custom_call.1} parent=67 // pred_check
          %p533 = pneg %p151
        $region82: #{tpu_custom_call.1} parent=67 // pred_check_branch
          %535 = sbr.rel (%p533) target = $region84
        $region83: #{tpu_custom_call.1} parent=67 // pred_region
          %536 = dma.done %s529, 128
        $region84: #{tpu_custom_call.1} parent=67 // pred_fallthru
          _
        // Predicated region
        $region85: #{tpu_custom_call.1} parent=67 // pred_check
          %p537 = pneg %p172
        $region86: #{tpu_custom_call.1} parent=67 // pred_check_branch
          %539 = sbr.rel (%p537) target = $region88
        $region87: #{tpu_custom_call.1} parent=67 // pred_region
          %540 = dma.done [#allocation11], 512
        $region88: #{tpu_custom_call.1} parent=67 // pred_fallthru
          _
        // Predicated region
        $region89: #{tpu_custom_call.1} parent=67 // pred_check
          %p541 = pneg %p214
        $region90: #{tpu_custom_call.1} parent=67 // pred_check_branch
          %543 = sbr.rel (%p541) target = $region92
        $region91: #{tpu_custom_call.1} parent=67 // pred_region
          %544 = dma.done [#allocation14], 512
        $region92: #{tpu_custom_call.1} parent=67 // pred_fallthru
          _
        // Predicated region
        $region93: #{tpu_custom_call.1} parent=67 // pred_check
          %p545 = pneg %p256
        $region94: #{tpu_custom_call.1} parent=67 // pred_check_branch
          %547 = sbr.rel (%p545) target = $region96
        $region95: #{tpu_custom_call.1} parent=67 // pred_region
          %548 = dma.done [#allocation14], 512
        $region96: #{tpu_custom_call.1} parent=67 // pred_fallthru
          _
        %s549 = sand.u32 %s58, 1
        %s550 = scalar_lea.sflag [#allocation5], %s549
        %s551 = sand.u32 %s58, 1
        %s552 = smul.addr %s551, 4
        %s553 = scalar_lea.vmem [#allocation4], %s552
        %p554 = pneg %p71
        %p555 = pneg %p68
        %s556 = sand.u32 %s36, 1
        %s557 = scalar_lea.sflag [#allocation8], %s556
        %s558 = sand.u32 %s86, 1
        %s559 = smul.addr %s558, 8
        %s560 = scalar_lea.vmem [#allocation7], %s559
        %p561 = pneg %p99
        %p562 = pneg %p96
        %s563 = sand.u32 %s36, 1
        %s564 = scalar_lea.sflag [#allocation8], %s563
        %s565 = sand.u32 %s112, 1
        %s566 = smul.addr %s565, 8
        %s567 = scalar_lea.vmem [#allocation9], %s566
        %p568 = pneg %p125
        %p569 = pneg %p122
        %s570 = sand.u32 %s36, 1
        %s571 = scalar_lea.sflag [#allocation11], %s570
        %s572 = sand.u32 %s138, 1
        %s573 = smul.addr %s572, 8
        %s574 = scalar_lea.vmem [#allocation10], %s573
        %p575 = pneg %p151
        %p576 = pneg %p148
        %p577 = pneg %p172
        %p578 = pneg %p169
        %p579 = pneg %p193
        %p580 = pneg %p190
        %p581 = pneg %p214
        %p582 = pneg %p211
        %p583 = pneg %p235
        %p584 = pneg %p232
        %p585 = pneg %p256
        %p586 = pneg %p253
        %p587 = pneg %p277
        %p588 = pneg %p274
        %p589 = pneg %p298
        %p590 = pneg %p295
        %p591 = pneg %p319
        %p592 = pneg %p316
        %p593 = pneg %p347
        %p594 = pneg %p344
        %s595 = sand.u32 %s334, 1
        %s596 = scalar_lea.sflag [#allocation6], %s595
        %s597 = sand.u32 %s334, 1
        %s598 = smul.addr %s597, 8
        %s599 = scalar_lea.vmem [#allocation16], %s598
        %v600 = vld [vmem:[%s505] sm:$0xf]
        %v601 = vunpack.c.l.bf16 %v600
        %p602 = scmp.eq.s32.totalorder %s41, 0
        // Predicated region
        $region97: #{tpu_custom_call.1} parent=67 // pred_check
          %p603 = pneg %p602
        $region98: #{tpu_custom_call.1} parent=67 // pred_check_branch
          %605 = sbr.rel (%p603) target = $region100
        $region99: #{tpu_custom_call.1} parent=67 // pred_region
          %v606 = vld [vmem:[%s523] sm:$0xff]
          %v607 = vld [vmem:[%s532] sm:$0xff]
          %v608 = vld [vmem:[#allocation13] sm:$0xff]
          %v609 = vld [vmem:[#allocation13 + $0x8] sm:$0xff]
          %v610 = vld [vmem:[#allocation13 + $0x10] sm:$0xff]
          %v611 = vld [vmem:[#allocation13 + $0x18] sm:$0xff]
          %v612 = vld [vmem:[%s7] sm:$0x1]
          %v614 = vlaneseq
          %v615 = vshrl.u32 %v614, 7
          %v616 = vsub.s32 0, %v615
          %v617 = vrot.slane %v612, %v616
          %vm619 = vcmask 261120
          %v621 = vsel %vm619, %v606, 0
          %623 = vmatprep.subr.mxu0 0.0
          %624 = vmatpush1.msra.mxu0 %v608
          %625 = vmatprep.subr.mxu0 0.0
          %626 = vmatpush1.msra.mxu0 %v609
          %627 = vmatprep.subr.mxu0 0.0
          %628 = vmatpush1.msra.mxu0 %v610
          %629 = vmatprep.subr.mxu0 0.0
          %630 = vmatpush1.msra.mxu0 %v611
          %631 = vmatprep.subr.mxu0 0.0
          %632 = vmatpush1.msra.mxu0 0.0
          %633 = vmatprep.subr.mxu0 0.0
          %634 = vmatpush1.msra.mxu0 0.0
          %635 = vmatprep.subr.mxu0 0.0
          %636 = vmatpush1.msra.mxu0 0.0
          %637 = vmatprep.subr.mxu0 0.0
          %638 = vmatpush1.msra.mxu0 0.0
          %639 = vmatprep.subr.mxu0 0.0
          %640 = vmatpush1.msra.mxu0 0.0
          %641 = vmatprep.subr.mxu0 0.0
          %642 = vmatpush1.msra.mxu0 0.0
          %643 = vmatprep.subr.mxu0 0.0
          %644 = vmatpush1.msra.mxu0 0.0
          %645 = vmatprep.subr.mxu0 0.0
          %646 = vmatpush1.msra.mxu0 0.0
          %647 = vmatprep.subr.mxu0 0.0
          %648 = vmatpush1.msra.mxu0 0.0
          %649 = vmatprep.subr.mxu0 0.0
          %650 = vmatpush1.msra.mxu0 0.0
          %651 = vmatprep.subr.mxu0 0.0
          %652 = vmatpush1.msra.mxu0 0.0
          %653 = vmatprep.subr.mxu0 0.0
          %654 = vmatpush1.msra.mxu0 0.0
          %655 = vmatprep.subr.mxu0 0.0
          %656 = vmatpush1.msra.mxu0 0.0
          %657 = vmatprep.subr.mxu0 0.0
          %658 = vmatpush1.msra.mxu0 0.0
          %659 = vmatprep.subr.mxu0 0.0
          %660 = vmatpush1.msra.mxu0 0.0
          %661 = vmatprep.subr.mxu0 0.0
          %662 = vmatpush1.msra.mxu0 0.0
          %663 = vmatprep.subr.mxu0 0.0
          %664 = vmatpush1.msra.mxu0 0.0
          %665 = vmatprep.subr.mxu0 0.0
          %666 = vmatpush1.msra.mxu0 0.0
          %667 = vmatprep.subr.mxu0 0.0
          %668 = vmatpush1.msra.mxu0 0.0
          %669 = vmatprep.subr.mxu0 0.0
          %670 = vmatpush1.msra.mxu0 0.0
          %671 = vmatprep.subr.mxu0 0.0
          %672 = vmatpush1.msra.mxu0 0.0
          %673 = vmatprep.subr.mxu0 0.0
          %674 = vmatpush1.msra.mxu0 0.0
          %675 = vmatprep.subr.mxu0 0.0
          %676 = vmatpush1.msra.mxu0 0.0
          %677 = vmatprep.subr.mxu0 0.0
          %678 = vmatpush1.msra.mxu0 0.0
          %679 = vmatprep.subr.mxu0 0.0
          %680 = vmatpush1.msra.mxu0 0.0
          %681 = vmatprep.subr.mxu0 0.0
          %682 = vmatpush1.msra.mxu0 0.0
          %683 = vmatprep.subr.mxu0 0.0
          %684 = vmatpush1.msra.mxu0 0.0
          %685 = vmatprep.subr.mxu0 0.0
          %686 = vmatpush1.msra.mxu0 0.0
          %687 = vmatprep.mubr.f32.mxu0 0.0
          %688 = vmatmul.mubr.f32.gmra.mrb[0].mxu0 %v621
          %v689 = vpop.f32.mrb[0].mxu0
          %v690 = vadd.f32 %v617, %v689
          %v691 = vpop.f32.mrb[0].mxu0
          %692 = vdwg.mxu0
          %693 = vst.msk [vmem:[#allocation2] sm:$0xff] %vm619, %v690
          %v694 = vld [vmem:[#allocation15] sm:$0xff]
          %v695 = vld [vmem:[#allocation15 + $0x8] sm:$0xff]
          %v696 = vld [vmem:[#allocation15 + $0x10] sm:$0xff]
          %v697 = vld [vmem:[#allocation15 + $0x18] sm:$0xff]
          %v698 = vld [vmem:[%s9] sm:$0x1]
          %v700 = vlaneseq
          %v701 = vshrl.u32 %v700, 7
          %v702 = vsub.s32 0, %v701
          %v703 = vrot.slane %v698, %v702
          %v706 = vsel %vm619, %v607, 0
          %708 = vmatprep.subr.mxu0 0.0
          %709 = vmatpush1.msra.mxu0 %v694
          %710 = vmatprep.subr.mxu0 0.0
          %711 = vmatpush1.msra.mxu0 %v695
          %712 = vmatprep.subr.mxu0 0.0
          %713 = vmatpush1.msra.mxu0 %v696
          %714 = vmatprep.subr.mxu0 0.0
          %715 = vmatpush1.msra.mxu0 %v697
          %716 = vmatprep.subr.mxu0 0.0
          %717 = vmatpush1.msra.mxu0 0.0
          %718 = vmatprep.subr.mxu0 0.0
          %719 = vmatpush1.msra.mxu0 0.0
          %720 = vmatprep.subr.mxu0 0.0
          %721 = vmatpush1.msra.mxu0 0.0
          %722 = vmatprep.subr.mxu0 0.0
          %723 = vmatpush1.msra.mxu0 0.0
          %724 = vmatprep.subr.mxu0 0.0
          %725 = vmatpush1.msra.mxu0 0.0
          %726 = vmatprep.subr.mxu0 0.0
          %727 = vmatpush1.msra.mxu0 0.0
          %728 = vmatprep.subr.mxu0 0.0
          %729 = vmatpush1.msra.mxu0 0.0
          %730 = vmatprep.subr.mxu0 0.0
          %731 = vmatpush1.msra.mxu0 0.0
          %732 = vmatprep.subr.mxu0 0.0
          %733 = vmatpush1.msra.mxu0 0.0
          %734 = vmatprep.subr.mxu0 0.0
          %735 = vmatpush1.msra.mxu0 0.0
          %736 = vmatprep.subr.mxu0 0.0
          %737 = vmatpush1.msra.mxu0 0.0
          %738 = vmatprep.subr.mxu0 0.0
          %739 = vmatpush1.msra.mxu0 0.0
          %740 = vmatprep.subr.mxu0 0.0
          %741 = vmatpush1.msra.mxu0 0.0
          %742 = vmatprep.subr.mxu0 0.0
          %743 = vmatpush1.msra.mxu0 0.0
          %744 = vmatprep.subr.mxu0 0.0
          %745 = vmatpush1.msra.mxu0 0.0
          %746 = vmatprep.subr.mxu0 0.0
          %747 = vmatpush1.msra.mxu0 0.0
          %748 = vmatprep.subr.mxu0 0.0
          %749 = vmatpush1.msra.mxu0 0.0
          %750 = vmatprep.subr.mxu0 0.0
          %751 = vmatpush1.msra.mxu0 0.0
          %752 = vmatprep.subr.mxu0 0.0
          %753 = vmatpush1.msra.mxu0 0.0
          %754 = vmatprep.subr.mxu0 0.0
          %755 = vmatpush1.msra.mxu0 0.0
          %756 = vmatprep.subr.mxu0 0.0
          %757 = vmatpush1.msra.mxu0 0.0
          %758 = vmatprep.subr.mxu0 0.0
          %759 = vmatpush1.msra.mxu0 0.0
          %760 = vmatprep.subr.mxu0 0.0
          %761 = vmatpush1.msra.mxu0 0.0
          %762 = vmatprep.subr.mxu0 0.0
          %763 = vmatpush1.msra.mxu0 0.0
          %764 = vmatprep.subr.mxu0 0.0
          %765 = vmatpush1.msra.mxu0 0.0
          %766 = vmatprep.subr.mxu0 0.0
          %767 = vmatpush1.msra.mxu0 0.0
          %768 = vmatprep.subr.mxu0 0.0
          %769 = vmatpush1.msra.mxu0 0.0
          %770 = vmatprep.subr.mxu0 0.0
          %771 = vmatpush1.msra.mxu0 0.0
          %772 = vmatprep.mubr.f32.mxu0 0.0
          %773 = vmatmul.mubr.f32.gmra.mrb[0].mxu0 %v706
          %v774 = vpop.f32.mrb[0].mxu0
          %v775 = vadd.f32 %v703, %v774
          %v776 = vpop.f32.mrb[0].mxu0
          %777 = vdwg.mxu0
          %778 = vst.msk [vmem:[#allocation3] sm:$0xff] %vm619, %v775
        $region100: #{tpu_custom_call.1} parent=67 // pred_fallthru
          _
        %v779 = vld [vmem:[%s514] sm:$0xff]
        %v780 = vld [vmem:[#allocation12] sm:$0xff]
        %v781 = vld [vmem:[#allocation12 + $0x8] sm:$0xff]
        %v782 = vld [vmem:[#allocation12 + $0x10] sm:$0xff]
        %v783 = vld [vmem:[#allocation12 + $0x18] sm:$0xff]
        %v784 = vld [vmem:[%s5] sm:$0x1]
        %v786 = vlaneseq
        %v787 = vshrl.u32 %v786, 7
        %v788 = vsub.s32 0, %v787
        %v789 = vrot.slane %v784, %v788
        %vm791 = vcmask 261120
        %v793 = vsel %vm791, %v779, 0
        %795 = vmatprep.subr.mxu0 0.0
        %796 = vmatpush1.msra.mxu0 %v780
        %797 = vmatprep.subr.mxu0 0.0
        %798 = vmatpush1.msra.mxu0 %v781
        %799 = vmatprep.subr.mxu0 0.0
        %800 = vmatpush1.msra.mxu0 %v782
        %801 = vmatprep.subr.mxu0 0.0
        %802 = vmatpush1.msra.mxu0 %v783
        %803 = vmatprep.subr.mxu0 0.0
        %804 = vmatpush1.msra.mxu0 0.0
        %805 = vmatprep.subr.mxu0 0.0
        %806 = vmatpush1.msra.mxu0 0.0
        %807 = vmatprep.subr.mxu0 0.0
        %808 = vmatpush1.msra.mxu0 0.0
        %809 = vmatprep.subr.mxu0 0.0
        %810 = vmatpush1.msra.mxu0 0.0
        %811 = vmatprep.subr.mxu0 0.0
        %812 = vmatpush1.msra.mxu0 0.0
        %813 = vmatprep.subr.mxu0 0.0
        %814 = vmatpush1.msra.mxu0 0.0
        %815 = vmatprep.subr.mxu0 0.0
        %816 = vmatpush1.msra.mxu0 0.0
        %817 = vmatprep.subr.mxu0 0.0
        %818 = vmatpush1.msra.mxu0 0.0
        %819 = vmatprep.subr.mxu0 0.0
        %820 = vmatpush1.msra.mxu0 0.0
        %821 = vmatprep.subr.mxu0 0.0
        %822 = vmatpush1.msra.mxu0 0.0
        %823 = vmatprep.subr.mxu0 0.0
        %824 = vmatpush1.msra.mxu0 0.0
        %825 = vmatprep.subr.mxu0 0.0
        %826 = vmatpush1.msra.mxu0 0.0
        %827 = vmatprep.subr.mxu0 0.0
        %828 = vmatpush1.msra.mxu0 0.0
        %829 = vmatprep.subr.mxu0 0.0
        %830 = vmatpush1.msra.mxu0 0.0
        %831 = vmatprep.subr.mxu0 0.0
        %832 = vmatpush1.msra.mxu0 0.0
        %833 = vmatprep.subr.mxu0 0.0
        %834 = vmatpush1.msra.mxu0 0.0
        %835 = vmatprep.subr.mxu0 0.0
        %836 = vmatpush1.msra.mxu0 0.0
        %837 = vmatprep.subr.mxu0 0.0
        %838 = vmatpush1.msra.mxu0 0.0
        %839 = vmatprep.subr.mxu0 0.0
        %840 = vmatpush1.msra.mxu0 0.0
        %841 = vmatprep.subr.mxu0 0.0
        %842 = vmatpush1.msra.mxu0 0.0
        %843 = vmatprep.subr.mxu0 0.0
        %844 = vmatpush1.msra.mxu0 0.0
        %845 = vmatprep.subr.mxu0 0.0
        %846 = vmatpush1.msra.mxu0 0.0
        %847 = vmatprep.subr.mxu0 0.0
        %848 = vmatpush1.msra.mxu0 0.0
        %849 = vmatprep.subr.mxu0 0.0
        %850 = vmatpush1.msra.mxu0 0.0
        %851 = vmatprep.subr.mxu0 0.0
        %852 = vmatpush1.msra.mxu0 0.0
        %853 = vmatprep.subr.mxu0 0.0
        %854 = vmatpush1.msra.mxu0 0.0
        %855 = vmatprep.subr.mxu0 0.0
        %856 = vmatpush1.msra.mxu0 0.0
        %857 = vmatprep.subr.mxu0 0.0
        %858 = vmatpush1.msra.mxu0 0.0
        %859 = vmatprep.mubr.f32.mxu0 0.0
        %860 = vmatmul.mubr.f32.gmra.mrb[0].mxu0 %v793
        %v861 = vpop.f32.mrb[0].mxu0
        %v862 = vadd.f32 %v789, %v861
        %v863 = vpop.f32.mrb[0].mxu0
        %864 = vdwg.mxu0
        %v865 = vld [vmem:[#allocation2] sm:$0xff]
        %v866 = vld [vmem:[#allocation3] sm:$0xff]
        %vm867 = vcmask 64512
        %v869 = vsel %vm867, %v862, 0
        %v872 = vsel %vm867, %v865, 0
        %874 = vmatprep.subr.mxu0 0.0
        %875 = vmatpush1.xpose.msra.mxu0 %v872
        %876 = vmatprep.subr.mxu0 0.0
        %877 = vmatpush1.xpose.msra.mxu0 0.0
        %878 = vmatprep.subr.mxu0 0.0
        %879 = vmatpush1.xpose.msra.mxu0 0.0
        %880 = vmatprep.subr.mxu0 0.0
        %881 = vmatpush1.xpose.msra.mxu0 0.0
        %882 = vmatprep.subr.mxu0 0.0
        %883 = vmatpush1.xpose.msra.mxu0 0.0
        %884 = vmatprep.subr.mxu0 0.0
        %885 = vmatpush1.xpose.msra.mxu0 0.0
        %886 = vmatprep.subr.mxu0 0.0
        %887 = vmatpush1.xpose.msra.mxu0 0.0
        %888 = vmatprep.subr.mxu0 0.0
        %889 = vmatpush1.xpose.msra.mxu0 0.0
        %890 = vmatprep.subr.mxu0 0.0
        %891 = vmatpush1.xpose.msra.mxu0 0.0
        %892 = vmatprep.subr.mxu0 0.0
        %893 = vmatpush1.xpose.msra.mxu0 0.0
        %894 = vmatprep.subr.mxu0 0.0
        %895 = vmatpush1.xpose.msra.mxu0 0.0
        %896 = vmatprep.subr.mxu0 0.0
        %897 = vmatpush1.xpose.msra.mxu0 0.0
        %898 = vmatprep.subr.mxu0 0.0
        %899 = vmatpush1.xpose.msra.mxu0 0.0
        %900 = vmatprep.subr.mxu0 0.0
        %901 = vmatpush1.xpose.msra.mxu0 0.0
        %902 = vmatprep.subr.mxu0 0.0
        %903 = vmatpush1.xpose.msra.mxu0 0.0
        %904 = vmatprep.subr.mxu0 0.0
        %905 = vmatpush1.xpose.msra.mxu0 0.0
        %906 = vmatprep.subr.mxu0 0.0
        %907 = vmatpush1.xpose.msra.mxu0 0.0
        %908 = vmatprep.subr.mxu0 0.0
        %909 = vmatpush1.xpose.msra.mxu0 0.0
        %910 = vmatprep.subr.mxu0 0.0
        %911 = vmatpush1.xpose.msra.mxu0 0.0
        %912 = vmatprep.subr.mxu0 0.0
        %913 = vmatpush1.xpose.msra.mxu0 0.0
        %914 = vmatprep.subr.mxu0 0.0
        %915 = vmatpush1.xpose.msra.mxu0 0.0
        %916 = vmatprep.subr.mxu0 0.0
        %917 = vmatpush1.xpose.msra.mxu0 0.0
        %918 = vmatprep.subr.mxu0 0.0
        %919 = vmatpush1.xpose.msra.mxu0 0.0
        %920 = vmatprep.subr.mxu0 0.0
        %921 = vmatpush1.xpose.msra.mxu0 0.0
        %922 = vmatprep.subr.mxu0 0.0
        %923 = vmatpush1.xpose.msra.mxu0 0.0
        %924 = vmatprep.subr.mxu0 0.0
        %925 = vmatpush1.xpose.msra.mxu0 0.0
        %926 = vmatprep.subr.mxu0 0.0
        %927 = vmatpush1.xpose.msra.mxu0 0.0
        %928 = vmatprep.subr.mxu0 0.0
        %929 = vmatpush1.xpose.msra.mxu0 0.0
        %930 = vmatprep.subr.mxu0 0.0
        %931 = vmatpush1.xpose.msra.mxu0 0.0
        %932 = vmatprep.subr.mxu0 0.0
        %933 = vmatpush1.xpose.msra.mxu0 0.0
        %934 = vmatprep.subr.mxu0 0.0
        %935 = vmatpush1.xpose.msra.mxu0 0.0
        %936 = vmatprep.subr.mxu0 0.0
        %937 = vmatpush1.xpose.msra.mxu0 0.0
        %938 = vmatprep.mubr.f32.mxu0 0.0
        %939 = vmatmul.mubr.f32.gmra.mrb[0].mxu0 %v869
        %v940 = vpop.f32.mrb[0].mxu0
        %v941 = vadd.f32 0.0, %v940
        %v942 = vpop.f32.mrb[0].mxu0
        %943 = vdwg.mxu0
        %v944 = vsel %vm867, %v941, -inf
        %945 = vmax.xlane.f32.xlu0 %v944
        %v946 = vpop.xlane.xlu0 %945
        %v947 = vsub.f32 %v941, %v946
        %v948 = vmul.f32 %v947, 1.442695
        %v949 = vpow.pop %v948
        %v950 = vsel %vm867, %v949, 0.0
        %951 = vadd.xlane.f32.xlu0 %v950
        %v952 = vpop.xlane.xlu0 %951
        %v953 = vrcp.pop %v952
        %v954 = vmul.f32 %v949, %v953
        %v955 = vmul.f32 %v954, %v601
        %v957 = vsel %vm867, %v955, 0
        %959 = vmatprep.subr.mxu0 0.0
        %960 = vmatpush1.msra.mxu0 %v866
        %961 = vmatprep.subr.mxu0 0.0
        %962 = vmatpush1.msra.mxu0 0.0
        %963 = vmatprep.subr.mxu0 0.0
        %964 = vmatpush1.msra.mxu0 0.0
        %965 = vmatprep.subr.mxu0 0.0
        %966 = vmatpush1.msra.mxu0 0.0
        %967 = vmatprep.subr.mxu0 0.0
        %968 = vmatpush1.msra.mxu0 0.0
        %969 = vmatprep.subr.mxu0 0.0
        %970 = vmatpush1.msra.mxu0 0.0
        %971 = vmatprep.subr.mxu0 0.0
        %972 = vmatpush1.msra.mxu0 0.0
        %973 = vmatprep.subr.mxu0 0.0
        %974 = vmatpush1.msra.mxu0 0.0
        %975 = vmatprep.subr.mxu0 0.0
        %976 = vmatpush1.msra.mxu0 0.0
        %977 = vmatprep.subr.mxu0 0.0
        %978 = vmatpush1.msra.mxu0 0.0
        %979 = vmatprep.subr.mxu0 0.0
        %980 = vmatpush1.msra.mxu0 0.0
        %981 = vmatprep.subr.mxu0 0.0
        %982 = vmatpush1.msra.mxu0 0.0
        %983 = vmatprep.subr.mxu0 0.0
        %984 = vmatpush1.msra.mxu0 0.0
        %985 = vmatprep.subr.mxu0 0.0
        %986 = vmatpush1.msra.mxu0 0.0
        %987 = vmatprep.subr.mxu0 0.0
        %988 = vmatpush1.msra.mxu0 0.0
        %989 = vmatprep.subr.mxu0 0.0
        %990 = vmatpush1.msra.mxu0 0.0
        %991 = vmatprep.subr.mxu0 0.0
        %992 = vmatpush1.msra.mxu0 0.0
        %993 = vmatprep.subr.mxu0 0.0
        %994 = vmatpush1.msra.mxu0 0.0
        %995 = vmatprep.subr.mxu0 0.0
        %996 = vmatpush1.msra.mxu0 0.0
        %997 = vmatprep.subr.mxu0 0.0
        %998 = vmatpush1.msra.mxu0 0.0
        %999 = vmatprep.subr.mxu0 0.0
        %1000 = vmatpush1.msra.mxu0 0.0
        %1001 = vmatprep.subr.mxu0 0.0
        %1002 = vmatpush1.msra.mxu0 0.0
        %1003 = vmatprep.subr.mxu0 0.0
        %1004 = vmatpush1.msra.mxu0 0.0
        %1005 = vmatprep.subr.mxu0 0.0
        %1006 = vmatpush1.msra.mxu0 0.0
        %1007 = vmatprep.subr.mxu0 0.0
        %1008 = vmatpush1.msra.mxu0 0.0
        %1009 = vmatprep.subr.mxu0 0.0
        %1010 = vmatpush1.msra.mxu0 0.0
        %1011 = vmatprep.subr.mxu0 0.0
        %1012 = vmatpush1.msra.mxu0 0.0
        %1013 = vmatprep.subr.mxu0 0.0
        %1014 = vmatpush1.msra.mxu0 0.0
        %1015 = vmatprep.subr.mxu0 0.0
        %1016 = vmatpush1.msra.mxu0 0.0
        %1017 = vmatprep.subr.mxu0 0.0
        %1018 = vmatpush1.msra.mxu0 0.0
        %1019 = vmatprep.subr.mxu0 0.0
        %1020 = vmatpush1.msra.mxu0 0.0
        %1021 = vmatprep.subr.mxu0 0.0
        %1022 = vmatpush1.msra.mxu0 0.0
        %1023 = vmatprep.mubr.f32.mxu0 0.0
        %1024 = vmatmul.mubr.f32.gmra.mrb[0].mxu0 %v957
        %v1025 = vpop.f32.mrb[0].mxu0
        %v1026 = vadd.f32 0.0, %v1025
        %v1027 = vpop.f32.mrb[0].mxu0
        %1028 = vdwg.mxu0
        %1029 = vrot.lane.b32.xlu0 %v862, 120
        %v1030 = vpop.permute.xlu0 %1029
        %1031 = vrot.lane.b32.xlu0 %v865, 120
        %v1032 = vpop.permute.xlu0 %1031
        %v1033 = vsel %vm867, %v1030, 0
        %v1035 = vsel %vm867, %v1032, 0
        %1037 = vmatprep.subr.mxu0 0.0
        %1038 = vmatpush1.xpose.msra.mxu0 %v1035
        %1039 = vmatprep.subr.mxu0 0.0
        %1040 = vmatpush1.xpose.msra.mxu0 0.0
        %1041 = vmatprep.subr.mxu0 0.0
        %1042 = vmatpush1.xpose.msra.mxu0 0.0
        %1043 = vmatprep.subr.mxu0 0.0
        %1044 = vmatpush1.xpose.msra.mxu0 0.0
        %1045 = vmatprep.subr.mxu0 0.0
        %1046 = vmatpush1.xpose.msra.mxu0 0.0
        %1047 = vmatprep.subr.mxu0 0.0
        %1048 = vmatpush1.xpose.msra.mxu0 0.0
        %1049 = vmatprep.subr.mxu0 0.0
        %1050 = vmatpush1.xpose.msra.mxu0 0.0
        %1051 = vmatprep.subr.mxu0 0.0
        %1052 = vmatpush1.xpose.msra.mxu0 0.0
        %1053 = vmatprep.subr.mxu0 0.0
        %1054 = vmatpush1.xpose.msra.mxu0 0.0
        %1055 = vmatprep.subr.mxu0 0.0
        %1056 = vmatpush1.xpose.msra.mxu0 0.0
        %1057 = vmatprep.subr.mxu0 0.0
        %1058 = vmatpush1.xpose.msra.mxu0 0.0
        %1059 = vmatprep.subr.mxu0 0.0
        %1060 = vmatpush1.xpose.msra.mxu0 0.0
        %1061 = vmatprep.subr.mxu0 0.0
        %1062 = vmatpush1.xpose.msra.mxu0 0.0
        %1063 = vmatprep.subr.mxu0 0.0
        %1064 = vmatpush1.xpose.msra.mxu0 0.0
        %1065 = vmatprep.subr.mxu0 0.0
        %1066 = vmatpush1.xpose.msra.mxu0 0.0
        %1067 = vmatprep.subr.mxu0 0.0
        %1068 = vmatpush1.xpose.msra.mxu0 0.0
        %1069 = vmatprep.subr.mxu0 0.0
        %1070 = vmatpush1.xpose.msra.mxu0 0.0
        %1071 = vmatprep.subr.mxu0 0.0
        %1072 = vmatpush1.xpose.msra.mxu0 0.0
        %1073 = vmatprep.subr.mxu0 0.0
        %1074 = vmatpush1.xpose.msra.mxu0 0.0
        %1075 = vmatprep.subr.mxu0 0.0
        %1076 = vmatpush1.xpose.msra.mxu0 0.0
        %1077 = vmatprep.subr.mxu0 0.0
        %1078 = vmatpush1.xpose.msra.mxu0 0.0
        %1079 = vmatprep.subr.mxu0 0.0
        %1080 = vmatpush1.xpose.msra.mxu0 0.0
        %1081 = vmatprep.subr.mxu0 0.0
        %1082 = vmatpush1.xpose.msra.mxu0 0.0
        %1083 = vmatprep.subr.mxu0 0.0
        %1084 = vmatpush1.xpose.msra.mxu0 0.0
        %1085 = vmatprep.subr.mxu0 0.0
        %1086 = vmatpush1.xpose.msra.mxu0 0.0
        %1087 = vmatprep.subr.mxu0 0.0
        %1088 = vmatpush1.xpose.msra.mxu0 0.0
        %1089 = vmatprep.subr.mxu0 0.0
        %1090 = vmatpush1.xpose.msra.mxu0 0.0
        %1091 = vmatprep.subr.mxu0 0.0
        %1092 = vmatpush1.xpose.msra.mxu0 0.0
        %1093 = vmatprep.subr.mxu0 0.0
        %1094 = vmatpush1.xpose.msra.mxu0 0.0
        %1095 = vmatprep.subr.mxu0 0.0
        %1096 = vmatpush1.xpose.msra.mxu0 0.0
        %1097 = vmatprep.subr.mxu0 0.0
        %1098 = vmatpush1.xpose.msra.mxu0 0.0
        %1099 = vmatprep.subr.mxu0 0.0
        %1100 = vmatpush1.xpose.msra.mxu0 0.0
        %1101 = vmatprep.mubr.f32.mxu0 0.0
        %1102 = vmatmul.mubr.f32.gmra.mrb[0].mxu0 %v1033
        %v1103 = vpop.f32.mrb[0].mxu0
        %v1104 = vadd.f32 0.0, %v1103
        %v1105 = vpop.f32.mrb[0].mxu0
        %1106 = vdwg.mxu0
        %v1107 = vsel %vm867, %v1104, -inf
        %1108 = vmax.xlane.f32.xlu0 %v1107
        %v1109 = vpop.xlane.xlu0 %1108
        %v1110 = vsub.f32 %v1104, %v1109
        %v1111 = vmul.f32 %v1110, 1.442695
        %v1112 = vpow.pop %v1111
        %v1113 = vsel %vm867, %v1112, 0.0
        %1114 = vadd.xlane.f32.xlu0 %v1113
        %v1115 = vpop.xlane.xlu0 %1114
        %v1116 = vrcp.pop %v1115
        %v1117 = vmul.f32 %v1112, %v1116
        %v1118 = vmul.f32 %v1117, %v601
        %1120 = vrot.lane.b32.xlu0 %v866, 120
        %v1121 = vpop.permute.xlu0 %1120
        %v1124 = vsel %vm867, %v1118, 0
        %1126 = vmatprep.subr.mxu0 0.0
        %1127 = vmatpush1.msra.mxu0 %v1121
        %1128 = vmatprep.subr.mxu0 0.0
        %1129 = vmatpush1.msra.mxu0 0.0
        %1130 = vmatprep.subr.mxu0 0.0
        %1131 = vmatpush1.msra.mxu0 0.0
        %1132 = vmatprep.subr.mxu0 0.0
        %1133 = vmatpush1.msra.mxu0 0.0
        %1134 = vmatprep.subr.mxu0 0.0
        %1135 = vmatpush1.msra.mxu0 0.0
        %1136 = vmatprep.subr.mxu0 0.0
        %1137 = vmatpush1.msra.mxu0 0.0
        %1138 = vmatprep.subr.mxu0 0.0
        %1139 = vmatpush1.msra.mxu0 0.0
        %1140 = vmatprep.subr.mxu0 0.0
        %1141 = vmatpush1.msra.mxu0 0.0
        %1142 = vmatprep.subr.mxu0 0.0
        %1143 = vmatpush1.msra.mxu0 0.0
        %1144 = vmatprep.subr.mxu0 0.0
        %1145 = vmatpush1.msra.mxu0 0.0
        %1146 = vmatprep.subr.mxu0 0.0
        %1147 = vmatpush1.msra.mxu0 0.0
        %1148 = vmatprep.subr.mxu0 0.0
        %1149 = vmatpush1.msra.mxu0 0.0
        %1150 = vmatprep.subr.mxu0 0.0
        %1151 = vmatpush1.msra.mxu0 0.0
        %1152 = vmatprep.subr.mxu0 0.0
        %1153 = vmatpush1.msra.mxu0 0.0
        %1154 = vmatprep.subr.mxu0 0.0
        %1155 = vmatpush1.msra.mxu0 0.0
        %1156 = vmatprep.subr.mxu0 0.0
        %1157 = vmatpush1.msra.mxu0 0.0
        %1158 = vmatprep.subr.mxu0 0.0
        %1159 = vmatpush1.msra.mxu0 0.0
        %1160 = vmatprep.subr.mxu0 0.0
        %1161 = vmatpush1.msra.mxu0 0.0
        %1162 = vmatprep.subr.mxu0 0.0
        %1163 = vmatpush1.msra.mxu0 0.0
        %1164 = vmatprep.subr.mxu0 0.0
        %1165 = vmatpush1.msra.mxu0 0.0
        %1166 = vmatprep.subr.mxu0 0.0
        %1167 = vmatpush1.msra.mxu0 0.0
        %1168 = vmatprep.subr.mxu0 0.0
        %1169 = vmatpush1.msra.mxu0 0.0
        %1170 = vmatprep.subr.mxu0 0.0
        %1171 = vmatpush1.msra.mxu0 0.0
        %1172 = vmatprep.subr.mxu0 0.0
        %1173 = vmatpush1.msra.mxu0 0.0
        %1174 = vmatprep.subr.mxu0 0.0
        %1175 = vmatpush1.msra.mxu0 0.0
        %1176 = vmatprep.subr.mxu0 0.0
        %1177 = vmatpush1.msra.mxu0 0.0
        %1178 = vmatprep.subr.mxu0 0.0
        %1179 = vmatpush1.msra.mxu0 0.0
        %1180 = vmatprep.subr.mxu0 0.0
        %1181 = vmatpush1.msra.mxu0 0.0
        %1182 = vmatprep.subr.mxu0 0.0
        %1183 = vmatpush1.msra.mxu0 0.0
        %1184 = vmatprep.subr.mxu0 0.0
        %1185 = vmatpush1.msra.mxu0 0.0
        %1186 = vmatprep.subr.mxu0 0.0
        %1187 = vmatpush1.msra.mxu0 0.0
        %1188 = vmatprep.subr.mxu0 0.0
        %1189 = vmatpush1.msra.mxu0 0.0
        %1190 = vmatprep.mubr.f32.mxu0 0.0
        %1191 = vmatmul.mubr.f32.gmra.mrb[0].mxu0 %v1124
        %v1192 = vpop.f32.mrb[0].mxu0
        %v1193 = vadd.f32 0.0, %v1192
        %v1194 = vpop.f32.mrb[0].mxu0
        %1195 = vdwg.mxu0
        %1196 = vrot.lane.b32.xlu0 %v862, 112
        %v1197 = vpop.permute.xlu0 %1196
        %1198 = vrot.lane.b32.xlu0 %v865, 112
        %v1199 = vpop.permute.xlu0 %1198
        %v1200 = vsel %vm867, %v1197, 0
        %v1202 = vsel %vm867, %v1199, 0
        %1204 = vmatprep.subr.mxu0 0.0
        %1205 = vmatpush1.xpose.msra.mxu0 %v1202
        %1206 = vmatprep.subr.mxu0 0.0
        %1207 = vmatpush1.xpose.msra.mxu0 0.0
        %1208 = vmatprep.subr.mxu0 0.0
        %1209 = vmatpush1.xpose.msra.mxu0 0.0
        %1210 = vmatprep.subr.mxu0 0.0
        %1211 = vmatpush1.xpose.msra.mxu0 0.0
        %1212 = vmatprep.subr.mxu0 0.0
        %1213 = vmatpush1.xpose.msra.mxu0 0.0
        %1214 = vmatprep.subr.mxu0 0.0
        %1215 = vmatpush1.xpose.msra.mxu0 0.0
        %1216 = vmatprep.subr.mxu0 0.0
        %1217 = vmatpush1.xpose.msra.mxu0 0.0
        %1218 = vmatprep.subr.mxu0 0.0
        %1219 = vmatpush1.xpose.msra.mxu0 0.0
        %1220 = vmatprep.subr.mxu0 0.0
        %1221 = vmatpush1.xpose.msra.mxu0 0.0
        %1222 = vmatprep.subr.mxu0 0.0
        %1223 = vmatpush1.xpose.msra.mxu0 0.0
        %1224 = vmatprep.subr.mxu0 0.0
        %1225 = vmatpush1.xpose.msra.mxu0 0.0
        %1226 = vmatprep.subr.mxu0 0.0
        %1227 = vmatpush1.xpose.msra.mxu0 0.0
        %1228 = vmatprep.subr.mxu0 0.0
        %1229 = vmatpush1.xpose.msra.mxu0 0.0
        %1230 = vmatprep.subr.mxu0 0.0
        %1231 = vmatpush1.xpose.msra.mxu0 0.0
        %1232 = vmatprep.subr.mxu0 0.0
        %1233 = vmatpush1.xpose.msra.mxu0 0.0
        %1234 = vmatprep.subr.mxu0 0.0
        %1235 = vmatpush1.xpose.msra.mxu0 0.0
        %1236 = vmatprep.subr.mxu0 0.0
        %1237 = vmatpush1.xpose.msra.mxu0 0.0
        %1238 = vmatprep.subr.mxu0 0.0
        %1239 = vmatpush1.xpose.msra.mxu0 0.0
        %1240 = vmatprep.subr.mxu0 0.0
        %1241 = vmatpush1.xpose.msra.mxu0 0.0
        %1242 = vmatprep.subr.mxu0 0.0
        %1243 = vmatpush1.xpose.msra.mxu0 0.0
        %1244 = vmatprep.subr.mxu0 0.0
        %1245 = vmatpush1.xpose.msra.mxu0 0.0
        %1246 = vmatprep.subr.mxu0 0.0
        %1247 = vmatpush1.xpose.msra.mxu0 0.0
        %1248 = vmatprep.subr.mxu0 0.0
        %1249 = vmatpush1.xpose.msra.mxu0 0.0
        %1250 = vmatprep.subr.mxu0 0.0
        %1251 = vmatpush1.xpose.msra.mxu0 0.0
        %1252 = vmatprep.subr.mxu0 0.0
        %1253 = vmatpush1.xpose.msra.mxu0 0.0
        %1254 = vmatprep.subr.mxu0 0.0
        %1255 = vmatpush1.xpose.msra.mxu0 0.0
        %1256 = vmatprep.subr.mxu0 0.0
        %1257 = vmatpush1.xpose.msra.mxu0 0.0
        %1258 = vmatprep.subr.mxu0 0.0
        %1259 = vmatpush1.xpose.msra.mxu0 0.0
        %1260 = vmatprep.subr.mxu0 0.0
        %1261 = vmatpush1.xpose.msra.mxu0 0.0
        %1262 = vmatprep.subr.mxu0 0.0
        %1263 = vmatpush1.xpose.msra.mxu0 0.0
        %1264 = vmatprep.subr.mxu0 0.0
        %1265 = vmatpush1.xpose.msra.mxu0 0.0
        %1266 = vmatprep.subr.mxu0 0.0
        %1267 = vmatpush1.xpose.msra.mxu0 0.0
        %1268 = vmatprep.mubr.f32.mxu0 0.0
        %1269 = vmatmul.mubr.f32.gmra.mrb[0].mxu0 %v1200
        %v1270 = vpop.f32.mrb[0].mxu0
        %v1271 = vadd.f32 0.0, %v1270
        %v1272 = vpop.f32.mrb[0].mxu0
        %1273 = vdwg.mxu0
        %v1274 = vsel %vm867, %v1271, -inf
        %1275 = vmax.xlane.f32.xlu0 %v1274
        %v1276 = vpop.xlane.xlu0 %1275
        %v1277 = vsub.f32 %v1271, %v1276
        %v1278 = vmul.f32 %v1277, 1.442695
        %v1279 = vpow.pop %v1278
        %v1280 = vsel %vm867, %v1279, 0.0
        %1281 = vadd.xlane.f32.xlu0 %v1280
        %v1282 = vpop.xlane.xlu0 %1281
        %v1283 = vrcp.pop %v1282
        %v1284 = vmul.f32 %v1279, %v1283
        %v1285 = vmul.f32 %v1284, %v601
        %1286 = vrot.lane.b32.xlu0 %v866, 112
        %v1287 = vpop.permute.xlu0 %1286
        %v1290 = vsel %vm867, %v1285, 0
        %1292 = vmatprep.subr.mxu0 0.0
        %1293 = vmatpush1.msra.mxu0 %v1287
        %1294 = vmatprep.subr.mxu0 0.0
        %1295 = vmatpush1.msra.mxu0 0.0
        %1296 = vmatprep.subr.mxu0 0.0
        %1297 = vmatpush1.msra.mxu0 0.0
        %1298 = vmatprep.subr.mxu0 0.0
        %1299 = vmatpush1.msra.mxu0 0.0
        %1300 = vmatprep.subr.mxu0 0.0
        %1301 = vmatpush1.msra.mxu0 0.0
        %1302 = vmatprep.subr.mxu0 0.0
        %1303 = vmatpush1.msra.mxu0 0.0
        %1304 = vmatprep.subr.mxu0 0.0
        %1305 = vmatpush1.msra.mxu0 0.0
        %1306 = vmatprep.subr.mxu0 0.0
        %1307 = vmatpush1.msra.mxu0 0.0
        %1308 = vmatprep.subr.mxu0 0.0
        %1309 = vmatpush1.msra.mxu0 0.0
        %1310 = vmatprep.subr.mxu0 0.0
        %1311 = vmatpush1.msra.mxu0 0.0
        %1312 = vmatprep.subr.mxu0 0.0
        %1313 = vmatpush1.msra.mxu0 0.0
        %1314 = vmatprep.subr.mxu0 0.0
        %1315 = vmatpush1.msra.mxu0 0.0
        %1316 = vmatprep.subr.mxu0 0.0
        %1317 = vmatpush1.msra.mxu0 0.0
        %1318 = vmatprep.subr.mxu0 0.0
        %1319 = vmatpush1.msra.mxu0 0.0
        %1320 = vmatprep.subr.mxu0 0.0
        %1321 = vmatpush1.msra.mxu0 0.0
        %1322 = vmatprep.subr.mxu0 0.0
        %1323 = vmatpush1.msra.mxu0 0.0
        %1324 = vmatprep.subr.mxu0 0.0
        %1325 = vmatpush1.msra.mxu0 0.0
        %1326 = vmatprep.subr.mxu0 0.0
        %1327 = vmatpush1.msra.mxu0 0.0
        %1328 = vmatprep.subr.mxu0 0.0
        %1329 = vmatpush1.msra.mxu0 0.0
        %1330 = vmatprep.subr.mxu0 0.0
        %1331 = vmatpush1.msra.mxu0 0.0
        %1332 = vmatprep.subr.mxu0 0.0
        %1333 = vmatpush1.msra.mxu0 0.0
        %1334 = vmatprep.subr.mxu0 0.0
        %1335 = vmatpush1.msra.mxu0 0.0
        %1336 = vmatprep.subr.mxu0 0.0
        %1337 = vmatpush1.msra.mxu0 0.0
        %1338 = vmatprep.subr.mxu0 0.0
        %1339 = vmatpush1.msra.mxu0 0.0
        %1340 = vmatprep.subr.mxu0 0.0
        %1341 = vmatpush1.msra.mxu0 0.0
        %1342 = vmatprep.subr.mxu0 0.0
        %1343 = vmatpush1.msra.mxu0 0.0
        %1344 = vmatprep.subr.mxu0 0.0
        %1345 = vmatpush1.msra.mxu0 0.0
        %1346 = vmatprep.subr.mxu0 0.0
        %1347 = vmatpush1.msra.mxu0 0.0
        %1348 = vmatprep.subr.mxu0 0.0
        %1349 = vmatpush1.msra.mxu0 0.0
        %1350 = vmatprep.subr.mxu0 0.0
        %1351 = vmatpush1.msra.mxu0 0.0
        %1352 = vmatprep.subr.mxu0 0.0
        %1353 = vmatpush1.msra.mxu0 0.0
        %1354 = vmatprep.subr.mxu0 0.0
        %1355 = vmatpush1.msra.mxu0 0.0
        %1356 = vmatprep.mubr.f32.mxu0 0.0
        %1357 = vmatmul.mubr.f32.gmra.mrb[0].mxu0 %v1290
        %v1358 = vpop.f32.mrb[0].mxu0
        %v1359 = vadd.f32 0.0, %v1358
        %v1360 = vpop.f32.mrb[0].mxu0
        %1361 = vdwg.mxu0
        %1362 = vrot.lane.b32.xlu0 %v862, 104
        %v1363 = vpop.permute.xlu0 %1362
        %1364 = vrot.lane.b32.xlu0 %v865, 104
        %v1365 = vpop.permute.xlu0 %1364
        %v1366 = vsel %vm867, %v1363, 0
        %v1368 = vsel %vm867, %v1365, 0
        %1370 = vmatprep.subr.mxu0 0.0
        %1371 = vmatpush1.xpose.msra.mxu0 %v1368
        %1372 = vmatprep.subr.mxu0 0.0
        %1373 = vmatpush1.xpose.msra.mxu0 0.0
        %1374 = vmatprep.subr.mxu0 0.0
        %1375 = vmatpush1.xpose.msra.mxu0 0.0
        %1376 = vmatprep.subr.mxu0 0.0
        %1377 = vmatpush1.xpose.msra.mxu0 0.0
        %1378 = vmatprep.subr.mxu0 0.0
        %1379 = vmatpush1.xpose.msra.mxu0 0.0
        %1380 = vmatprep.subr.mxu0 0.0
        %1381 = vmatpush1.xpose.msra.mxu0 0.0
        %1382 = vmatprep.subr.mxu0 0.0
        %1383 = vmatpush1.xpose.msra.mxu0 0.0
        %1384 = vmatprep.subr.mxu0 0.0
        %1385 = vmatpush1.xpose.msra.mxu0 0.0
        %1386 = vmatprep.subr.mxu0 0.0
        %1387 = vmatpush1.xpose.msra.mxu0 0.0
        %1388 = vmatprep.subr.mxu0 0.0
        %1389 = vmatpush1.xpose.msra.mxu0 0.0
        %1390 = vmatprep.subr.mxu0 0.0
        %1391 = vmatpush1.xpose.msra.mxu0 0.0
        %1392 = vmatprep.subr.mxu0 0.0
        %1393 = vmatpush1.xpose.msra.mxu0 0.0
        %1394 = vmatprep.subr.mxu0 0.0
        %1395 = vmatpush1.xpose.msra.mxu0 0.0
        %1396 = vmatprep.subr.mxu0 0.0
        %1397 = vmatpush1.xpose.msra.mxu0 0.0
        %1398 = vmatprep.subr.mxu0 0.0
        %1399 = vmatpush1.xpose.msra.mxu0 0.0
        %1400 = vmatprep.subr.mxu0 0.0
        %1401 = vmatpush1.xpose.msra.mxu0 0.0
        %1402 = vmatprep.subr.mxu0 0.0
        %1403 = vmatpush1.xpose.msra.mxu0 0.0
        %1404 = vmatprep.subr.mxu0 0.0
        %1405 = vmatpush1.xpose.msra.mxu0 0.0
        %1406 = vmatprep.subr.mxu0 0.0
        %1407 = vmatpush1.xpose.msra.mxu0 0.0
        %1408 = vmatprep.subr.mxu0 0.0
        %1409 = vmatpush1.xpose.msra.mxu0 0.0
        %1410 = vmatprep.subr.mxu0 0.0
        %1411 = vmatpush1.xpose.msra.mxu0 0.0
        %1412 = vmatprep.subr.mxu0 0.0
        %1413 = vmatpush1.xpose.msra.mxu0 0.0
        %1414 = vmatprep.subr.mxu0 0.0
        %1415 = vmatpush1.xpose.msra.mxu0 0.0
        %1416 = vmatprep.subr.mxu0 0.0
        %1417 = vmatpush1.xpose.msra.mxu0 0.0
        %1418 = vmatprep.subr.mxu0 0.0
        %1419 = vmatpush1.xpose.msra.mxu0 0.0
        %1420 = vmatprep.subr.mxu0 0.0
        %1421 = vmatpush1.xpose.msra.mxu0 0.0
        %1422 = vmatprep.subr.mxu0 0.0
        %1423 = vmatpush1.xpose.msra.mxu0 0.0
        %1424 = vmatprep.subr.mxu0 0.0
        %1425 = vmatpush1.xpose.msra.mxu0 0.0
        %1426 = vmatprep.subr.mxu0 0.0
        %1427 = vmatpush1.xpose.msra.mxu0 0.0
        %1428 = vmatprep.subr.mxu0 0.0
        %1429 = vmatpush1.xpose.msra.mxu0 0.0
        %1430 = vmatprep.subr.mxu0 0.0
        %1431 = vmatpush1.xpose.msra.mxu0 0.0
        %1432 = vmatprep.subr.mxu0 0.0
        %1433 = vmatpush1.xpose.msra.mxu0 0.0
        %1434 = vmatprep.mubr.f32.mxu0 0.0
        %1435 = vmatmul.mubr.f32.gmra.mrb[0].mxu0 %v1366
        %v1436 = vpop.f32.mrb[0].mxu0
        %v1437 = vadd.f32 0.0, %v1436
        %v1438 = vpop.f32.mrb[0].mxu0
        %1439 = vdwg.mxu0
        %v1440 = vsel %vm867, %v1437, -inf
        %1441 = vmax.xlane.f32.xlu0 %v1440
        %v1442 = vpop.xlane.xlu0 %1441
        %v1443 = vsub.f32 %v1437, %v1442
        %v1444 = vmul.f32 %v1443, 1.442695
        %v1445 = vpow.pop %v1444
        %v1446 = vsel %vm867, %v1445, 0.0
        %1447 = vadd.xlane.f32.xlu0 %v1446
        %v1448 = vpop.xlane.xlu0 %1447
        %v1449 = vrcp.pop %v1448
        %v1450 = vmul.f32 %v1445, %v1449
        %v1451 = vmul.f32 %v1450, %v601
        %1452 = vrot.lane.b32.xlu0 %v866, 104
        %v1453 = vpop.permute.xlu0 %1452
        %v1456 = vsel %vm867, %v1451, 0
        %1458 = vmatprep.subr.mxu0 0.0
        %1459 = vmatpush1.msra.mxu0 %v1453
        %1460 = vmatprep.subr.mxu0 0.0
        %1461 = vmatpush1.msra.mxu0 0.0
        %1462 = vmatprep.subr.mxu0 0.0
        %1463 = vmatpush1.msra.mxu0 0.0
        %1464 = vmatprep.subr.mxu0 0.0
        %1465 = vmatpush1.msra.mxu0 0.0
        %1466 = vmatprep.subr.mxu0 0.0
        %1467 = vmatpush1.msra.mxu0 0.0
        %1468 = vmatprep.subr.mxu0 0.0
        %1469 = vmatpush1.msra.mxu0 0.0
        %1470 = vmatprep.subr.mxu0 0.0
        %1471 = vmatpush1.msra.mxu0 0.0
        %1472 = vmatprep.subr.mxu0 0.0
        %1473 = vmatpush1.msra.mxu0 0.0
        %1474 = vmatprep.subr.mxu0 0.0
        %1475 = vmatpush1.msra.mxu0 0.0
        %1476 = vmatprep.subr.mxu0 0.0
        %1477 = vmatpush1.msra.mxu0 0.0
        %1478 = vmatprep.subr.mxu0 0.0
        %1479 = vmatpush1.msra.mxu0 0.0
        %1480 = vmatprep.subr.mxu0 0.0
        %1481 = vmatpush1.msra.mxu0 0.0
        %1482 = vmatprep.subr.mxu0 0.0
        %1483 = vmatpush1.msra.mxu0 0.0
        %1484 = vmatprep.subr.mxu0 0.0
        %1485 = vmatpush1.msra.mxu0 0.0
        %1486 = vmatprep.subr.mxu0 0.0
        %1487 = vmatpush1.msra.mxu0 0.0
        %1488 = vmatprep.subr.mxu0 0.0
        %1489 = vmatpush1.msra.mxu0 0.0
        %1490 = vmatprep.subr.mxu0 0.0
        %1491 = vmatpush1.msra.mxu0 0.0
        %1492 = vmatprep.subr.mxu0 0.0
        %1493 = vmatpush1.msra.mxu0 0.0
        %1494 = vmatprep.subr.mxu0 0.0
        %1495 = vmatpush1.msra.mxu0 0.0
        %1496 = vmatprep.subr.mxu0 0.0
        %1497 = vmatpush1.msra.mxu0 0.0
        %1498 = vmatprep.subr.mxu0 0.0
        %1499 = vmatpush1.msra.mxu0 0.0
        %1500 = vmatprep.subr.mxu0 0.0
        %1501 = vmatpush1.msra.mxu0 0.0
        %1502 = vmatprep.subr.mxu0 0.0
        %1503 = vmatpush1.msra.mxu0 0.0
        %1504 = vmatprep.subr.mxu0 0.0
        %1505 = vmatpush1.msra.mxu0 0.0
        %1506 = vmatprep.subr.mxu0 0.0
        %1507 = vmatpush1.msra.mxu0 0.0
        %1508 = vmatprep.subr.mxu0 0.0
        %1509 = vmatpush1.msra.mxu0 0.0
        %1510 = vmatprep.subr.mxu0 0.0
        %1511 = vmatpush1.msra.mxu0 0.0
        %1512 = vmatprep.subr.mxu0 0.0
        %1513 = vmatpush1.msra.mxu0 0.0
        %1514 = vmatprep.subr.mxu0 0.0
        %1515 = vmatpush1.msra.mxu0 0.0
        %1516 = vmatprep.subr.mxu0 0.0
        %1517 = vmatpush1.msra.mxu0 0.0
        %1518 = vmatprep.subr.mxu0 0.0
        %1519 = vmatpush1.msra.mxu0 0.0
        %1520 = vmatprep.subr.mxu0 0.0
        %1521 = vmatpush1.msra.mxu0 0.0
        %1522 = vmatprep.mubr.f32.mxu0 0.0
        %1523 = vmatmul.mubr.f32.gmra.mrb[0].mxu0 %v1456
        %v1524 = vpop.f32.mrb[0].mxu0
        %v1525 = vadd.f32 0.0, %v1524
        %v1526 = vpop.f32.mrb[0].mxu0
        %1527 = vdwg.mxu0
        %1529 = vrot.lane.b32.xlu0 %v1193, 8
        %v1530 = vpop.permute.xlu0 %1529
        %1533 = vrot.lane.b32.xlu0 %v1359, 16
        %v1534 = vpop.permute.xlu0 %1533
        %1537 = vrot.lane.b32.xlu0 %v1525, 24
        %v1538 = vpop.permute.xlu0 %1537
        %v1540 = vsel %vm867, %v1026, %v1530
        %vm1541 = vcmask 130048
        %v1542 = vsel %vm1541, %v1540, %v1534
        %vm1543 = vcmask 195584
        %v1544 = vsel %vm1543, %v1542, %v1538
        %v1545 = vld [vmem:[%s10] sm:$0xff]
        %v1546 = vld [vmem:[%s10 + $0x8] sm:$0xff]
        %v1547 = vld [vmem:[%s10 + $0x10] sm:$0xff]
        %v1548 = vld [vmem:[%s10 + $0x18] sm:$0xff]
        %v1549 = vld [vmem:[%s11] sm:$0x1]
        %v1551 = vlaneseq
        %v1552 = vshrl.u32 %v1551, 7
        %v1553 = vsub.s32 0, %v1552
        %v1554 = vrot.slane %v1549, %v1553
        %v1557 = vsel %vm791, %v1544, 0
        %1559 = vmatprep.subr.mxu0 0.0
        %1560 = vmatpush1.msra.mxu0 %v1545
        %1561 = vmatprep.subr.mxu0 0.0
        %1562 = vmatpush1.msra.mxu0 %v1546
        %1563 = vmatprep.subr.mxu0 0.0
        %1564 = vmatpush1.msra.mxu0 %v1547
        %1565 = vmatprep.subr.mxu0 0.0
        %1566 = vmatpush1.msra.mxu0 %v1548
        %1567 = vmatprep.subr.mxu0 0.0
        %1568 = vmatpush1.msra.mxu0 0.0
        %1569 = vmatprep.subr.mxu0 0.0
        %1570 = vmatpush1.msra.mxu0 0.0
        %1571 = vmatprep.subr.mxu0 0.0
        %1572 = vmatpush1.msra.mxu0 0.0
        %1573 = vmatprep.subr.mxu0 0.0
        %1574 = vmatpush1.msra.mxu0 0.0
        %1575 = vmatprep.subr.mxu0 0.0
        %1576 = vmatpush1.msra.mxu0 0.0
        %1577 = vmatprep.subr.mxu0 0.0
        %1578 = vmatpush1.msra.mxu0 0.0
        %1579 = vmatprep.subr.mxu0 0.0
        %1580 = vmatpush1.msra.mxu0 0.0
        %1581 = vmatprep.subr.mxu0 0.0
        %1582 = vmatpush1.msra.mxu0 0.0
        %1583 = vmatprep.subr.mxu0 0.0
        %1584 = vmatpush1.msra.mxu0 0.0
        %1585 = vmatprep.subr.mxu0 0.0
        %1586 = vmatpush1.msra.mxu0 0.0
        %1587 = vmatprep.subr.mxu0 0.0
        %1588 = vmatpush1.msra.mxu0 0.0
        %1589 = vmatprep.subr.mxu0 0.0
        %1590 = vmatpush1.msra.mxu0 0.0
        %1591 = vmatprep.subr.mxu0 0.0
        %1592 = vmatpush1.msra.mxu0 0.0
        %1593 = vmatprep.subr.mxu0 0.0
        %1594 = vmatpush1.msra.mxu0 0.0
        %1595 = vmatprep.subr.mxu0 0.0
        %1596 = vmatpush1.msra.mxu0 0.0
        %1597 = vmatprep.subr.mxu0 0.0
        %1598 = vmatpush1.msra.mxu0 0.0
        %1599 = vmatprep.subr.mxu0 0.0
        %1600 = vmatpush1.msra.mxu0 0.0
        %1601 = vmatprep.subr.mxu0 0.0
        %1602 = vmatpush1.msra.mxu0 0.0
        %1603 = vmatprep.subr.mxu0 0.0
        %1604 = vmatpush1.msra.mxu0 0.0
        %1605 = vmatprep.subr.mxu0 0.0
        %1606 = vmatpush1.msra.mxu0 0.0
        %1607 = vmatprep.subr.mxu0 0.0
        %1608 = vmatpush1.msra.mxu0 0.0
        %1609 = vmatprep.subr.mxu0 0.0
        %1610 = vmatpush1.msra.mxu0 0.0
        %1611 = vmatprep.subr.mxu0 0.0
        %1612 = vmatpush1.msra.mxu0 0.0
        %1613 = vmatprep.subr.mxu0 0.0
        %1614 = vmatpush1.msra.mxu0 0.0
        %1615 = vmatprep.subr.mxu0 0.0
        %1616 = vmatpush1.msra.mxu0 0.0
        %1617 = vmatprep.subr.mxu0 0.0
        %1618 = vmatpush1.msra.mxu0 0.0
        %1619 = vmatprep.subr.mxu0 0.0
        %1620 = vmatpush1.msra.mxu0 0.0
        %1621 = vmatprep.subr.mxu0 0.0
        %1622 = vmatpush1.msra.mxu0 0.0
        %1623 = vmatprep.mubr.f32.mxu0 0.0
        %1624 = vmatmul.mubr.f32.gmra.mrb[0].mxu0 %v1557
        %v1625 = vpop.f32.mrb[0].mxu0
        %v1626 = vadd.f32 %v1554, %v1625
        %v1627 = vpop.f32.mrb[0].mxu0
        %1628 = vdwg.mxu0
        %1629 = vst.msk [vmem:[%s599] sm:$0xff] %vm791, %v1626
        %s1630 = sand.u32 %s334, 1
        %s1631 = scalar_lea.sflag [#allocation6], %s1630
        %s1632 = sand.u32 %s334, 1
        %s1633 = smul.addr %s1632, 8
        %s1634 = scalar_lea.vmem [#allocation16], %s1633
        // Predicated region
        $region101: #{tpu_custom_call.1} parent=67 // pred_check
          %p1635 = pneg %p344
        $region102: #{tpu_custom_call.1} parent=67 // pred_check_branch
          %1637 = sbr.rel (%p1635) target = $region104
        $region103: #{tpu_custom_call.1} parent=67 // pred_region
          %s1639 = ssub.s32 128, 128
          %1640 = vsyncadd %s1631, %s1639
          %s1641 = sadd.s32 %s41, %s40
          %s1642 = smul.addr %s1641, 128
          %s1643 = scalar_lea.hbm %s12, %s1642
          %s1645 = sshll.u32 %s1634, 4
          %s1646 = int_to_ptr.vmem [resolvable:$true] %s1645
          %1648 = dma.vmem_to_hbm [thread:$0]  %s1646, 128, %s1643, %s1631
        $region104: #{tpu_custom_call.1} parent=67 // pred_fallthru
          _
      $region68: #{tpu_custom_call.1} parent=5 // pred_fallthru
        _
      %p1649 = scmp.le.s32.totalorder 2, %s31
      // Predicated region
      $region105: #{tpu_custom_call.1} parent=5 // pred_check
        %p1650 = pneg %p1649
      $region106: #{tpu_custom_call.1} parent=5 // pred_check_branch
        %1652 = sbr.rel (%p1650) target = $region108
      $region107: #{tpu_custom_call.1} parent=5 // pred_region
        %s1653 = ssub.s32 %s31, 2
        // Predicated region
        $region109: #{tpu_custom_call.1} parent=107 // pred_check
          %p1654 = pneg %p350
        $region110: #{tpu_custom_call.1} parent=107 // pred_check_branch
          %1656 = sbr.rel (%p1654) target = $region112
        $region111: #{tpu_custom_call.1} parent=107 // pred_region
          %s1657 = sand.u32 %s335, 1
          %s1658 = scalar_lea.sflag [#allocation6], %s1657
          %s1659 = sand.u32 %s335, 1
          %s1660 = smul.addr %s1659, 8
          %s1661 = scalar_lea.vmem [#allocation16], %s1660
          %1662 = dma.done %s1658, 128
        $region112: #{tpu_custom_call.1} parent=107 // pred_fallthru
          _
      $region108: #{tpu_custom_call.1} parent=5 // pred_fallthru
        _
    $region6: #{tpu_custom_call.1} parent=1 // loop_footer
      %s35 = sadd.s32 1, %s31
    $region7: #{tpu_custom_call.1} parent=1 // loop_footer_branch
      %30 = sbr.rel target = $region3
    $region8: #{tpu_custom_call.1} parent=1 // loop_exit
      _
    %1663 = vsyncpa [#allocation5], 1
    %s1664 = scalar_lea.sflag [#allocation5], 1
    %1665 = vsyncpa %s1664, 1
    %1666 = vsyncpa [#allocation8], 1
    %s1667 = scalar_lea.sflag [#allocation8], 1
    %1668 = vsyncpa %s1667, 1
    %1669 = vsyncpa [#allocation11], 1
    %s1670 = scalar_lea.sflag [#allocation11], 1
    %1671 = vsyncpa %s1670, 1
    %1672 = vsyncpa [#allocation14], 1
    %1673 = vsyncpa [#allocation6], 1
    %s1674 = scalar_lea.sflag [#allocation6], 1
    %1675 = vsyncpa %s1674, 1

</llo_original>
